<compile_context>
chip_gen: v7x
topology: tpu7x:2x2x1
jax: 0.10.0
libtpu: 0.0.40
codegen_flags: <defaults>
</compile_context>

<pallas_src>
import math

import jax
import jax.numpy as jnp
from jax.experimental import pallas as pl
from jax.experimental.pallas import tpu as pltpu


def _round_up(v, m):
    return (v + m - 1) // m * m


def _choose_h_tile(h, w, p, C, itemsize, target_block_bytes=4 << 20,
                   max_unroll=2048):
    """Largest h-tile (divisor of h) whose padded VMEM block footprint fits."""
    M2 = w * p * p

    def padded_block_bytes(th):
        # input block (th*M2, C) + output block (C, th*M2), (8,128)-tiled VMEM
        inb = _round_up(th * M2, 8) * _round_up(C, 128) * itemsize
        outb = _round_up(C, 8) * _round_up(th * M2, 128) * itemsize
        return inb + outb

    def legal(th):
        if h % th != 0:
            return False
        # Mosaic block rule: minor dim %128 (or full extent); th==h is full.
        return th == h or (th * M2) % 128 == 0

    cands = [t for t in range(1, h + 1) if legal(t)]   # always contains h
    best = None
    for t in sorted(cands):
        if (padded_block_bytes(t) <= target_block_bytes
                and t * p * (w + 1) <= max_unroll):
            best = t
    if best is None:
        best = min(cands)
    return best, padded_block_bytes(best)


def _make_unpatchify_kernel(th, w, p, C):
    pp = p * p
    wp = w * p
    M2 = w * pp

    def kernel(x_ref, o_ref, row_buf):
        # x_ref:   (th*M2, C)  rows ordered (i, j, pi, qi)   [contiguous HBM slab]
        # o_ref:   (C, th*M2)  cols ordered (i, pi, j, qi)   [= NCHW rows i*p..]
        # row_buf: (wp, C)     scratch holding rows (j, qi) for one (i, pi)
        for i in range(th):
            for pi in range(p):
                for j in range(w):
                    src = (i * w + j) * pp + pi * p
                    # contiguous (p, C) sublane-slice copy (static offsets)
                    row_buf[j * p:(j + 1) * p, :] = x_ref[src:src + p, :]
                col0 = (i * p + pi) * wp
                # single 2-D (wp, C) -> (C, wp) transpose, lane-dense store
                o_ref[:, col0:col0 + wp] = row_buf[...].T

    return kernel


def unpatchify_forward(x, p, *, target_block_bytes=4 << 20):
    """x: (N, L, p*p*C) -> imgs: (N, C, h*p, w*p), matching the PyTorch module."""
    N, L, D = x.shape
    h = w = math.isqrt(L)
    assert h * w == L, "input feature has wrong size"
    assert D % (p * p) == 0, "channel dim must be divisible by p*p"
    C = D // (p * p)
    M2 = w * p * p
    H, W = h * p, w * p
    itemsize = jnp.dtype(x.dtype).itemsize

    th, blk_bytes = _choose_h_tile(h, w, p, C, itemsize, target_block_bytes)
    n_it = h // th

    # Free contiguous reshape: rows ordered (i, j, pi, qi), minor dim C.
    xv = x.reshape(N, h * M2, C)

    scratch_bytes = _round_up(w * p, 8) * _round_up(C, 128) * itemsize
    vmem_needed = 2 * blk_bytes + scratch_bytes + (2 << 20)
    vmem_limit = int(max(32 << 20, min(48 << 20, _round_up(vmem_needed, 1 << 20))))

    kernel = _make_unpatchify_kernel(th, w, p, C)

    # Output laid out as (N, C, h*p*w*p): the last axis, ordered (i, pi, j, qi),
    # IS the row-major (H, W) plane -> final reshape to NCHW is free.
    outv = pl.pallas_call(
        kernel,
        out_shape=jax.ShapeDtypeStruct((N, C, h * M2), x.dtype),
        grid_spec=pltpu.PrefetchScalarGridSpec(
            num_scalar_prefetch=0,
            grid=(N, n_it),
            in_specs=[
                pl.BlockSpec((None, th * M2, C), lambda n, it: (n, it, 0)),
            ],
            out_specs=pl.BlockSpec((None, C, th * M2), lambda n, it: (n, 0, it)),
            scratch_shapes=[pltpu.VMEM((w * p, C), x.dtype)],
        ),
        compiler_params=pltpu.CompilerParams(
            dimension_semantics=("parallel", "parallel"),
            vmem_limit_bytes=vmem_limit,
        ),
        cost_estimate=pl.CostEstimate(
            flops=0, transcendentals=0, bytes_accessed=2 * x.size * itemsize),
    )(xv)

    return outv.reshape(N, C, H, W)


# ----------------------------------------------------------------------------
# Pure-JAX reference (mirrors the PyTorch _unpatchify exactly)
# ----------------------------------------------------------------------------
def unpatchify_reference(x, p):
    N, L, D = x.shape
    h = w = math.isqrt(L)
    assert h * w == L
    C = D // (p * p)
    x6 = x.reshape(N, h, w, p, p, C)
    y = jnp.einsum('nhwpqc->nchpwq', x6)
    return y.reshape(N, C, h * p, w * p)


if __name__ == "__main__":
    # Small, module-consistent shapes: N=2, h=w=4 (L=16), p=4, C=32 -> D=512.
    N, p, h, C = 2, 4, 4, 32
    L = h * h
    D = p * p * C

    key = jax.random.PRNGKey(0)
    x = jax.random.normal(key, (N, L, D), jnp.float32)

    out = jax.block_until_ready(unpatchify_forward(x, p))
    ref = unpatchify_reference(x, p)

    assert out.shape == (N, C, h * p, h * p)
    assert bool(jnp.array_equal(out, ref)), "mismatch vs reference"
    print("KERNEL_OK")
</pallas_src>

<mosaic_0001>
module attributes {stable_mosaic.version = 11 : i64} {
  func.func @kernel(%arg0: i32, %arg1: i32, %arg2: memref<1x256x32xf32, #tpu.memory_space<vmem>>, %arg3: memref<1x32x256xf32, #tpu.memory_space<vmem>>, %arg4: memref<16x32xf32, #tpu.memory_space<vmem>>) attributes {dimension_semantics = [#tpu.dimension_semantics<parallel>, #tpu.dimension_semantics<parallel>], iteration_bounds = array<i64: 2, 1>, scalar_prefetch = 0 : i64, scratch_operands = 1 : i64, tpu.core_type = #tpu.core_type<tc>, window_params = [{transform_indices = @transform_0, window_bounds = array<i64: 1, 256, 32>}, {transform_indices = @transform_1, window_bounds = array<i64: 1, 32, 256>}]} {
    %c0 = arith.constant 0 : index
    %c0_0 = arith.constant 0 : index
    %c0_1 = arith.constant 0 : index
    %0 = vector.load %arg2[%c0, %c0_0, %c0_1] : memref<1x256x32xf32, #tpu.memory_space<vmem>>, vector<1x4x32xf32>
    %1 = vector.shape_cast %0 : vector<1x4x32xf32> to vector<4x32xf32>
    %c0_2 = arith.constant 0 : index
    %c0_3 = arith.constant 0 : index
    %2 = vector.load %arg4[%c0_2, %c0_3] : memref<16x32xf32, #tpu.memory_space<vmem>>, vector<4x32xf32>
    tpu.vector_store %arg4[%c0_2, %c0_3], %1 {strides = array<i32>} : memref<16x32xf32, #tpu.memory_space<vmem>>, vector<4x32xf32>,
    %c0_4 = arith.constant 0 : index
    %c16 = arith.constant 16 : index
    %c0_5 = arith.constant 0 : index
    %3 = vector.load %arg2[%c0_4, %c16, %c0_5] : memref<1x256x32xf32, #tpu.memory_space<vmem>>, vector<1x4x32xf32>
    %4 = vector.shape_cast %3 : vector<1x4x32xf32> to vector<4x32xf32>
    %c4 = arith.constant 4 : index
    %c0_6 = arith.constant 0 : index
    %5 = vector.load %arg4[%c4, %c0_6] : memref<16x32xf32, #tpu.memory_space<vmem>>, vector<4x32xf32>
    tpu.vector_store %arg4[%c4, %c0_6], %4 {strides = array<i32>} : memref<16x32xf32, #tpu.memory_space<vmem>>, vector<4x32xf32>,
    %c0_7 = arith.constant 0 : index
    %c32 = arith.constant 32 : index
    %c0_8 = arith.constant 0 : index
    %6 = vector.load %arg2[%c0_7, %c32, %c0_8] : memref<1x256x32xf32, #tpu.memory_space<vmem>>, vector<1x4x32xf32>
    %7 = vector.shape_cast %6 : vector<1x4x32xf32> to vector<4x32xf32>
    %c8 = arith.constant 8 : index
    %c0_9 = arith.constant 0 : index
    %8 = vector.load %arg4[%c8, %c0_9] : memref<16x32xf32, #tpu.memory_space<vmem>>, vector<4x32xf32>
    tpu.vector_store %arg4[%c8, %c0_9], %7 {strides = array<i32>} : memref<16x32xf32, #tpu.memory_space<vmem>>, vector<4x32xf32>,
    %c0_10 = arith.constant 0 : index
    %c48 = arith.constant 48 : index
    %c0_11 = arith.constant 0 : index
    %9 = vector.load %arg2[%c0_10, %c48, %c0_11] : memref<1x256x32xf32, #tpu.memory_space<vmem>>, vector<1x4x32xf32>
    %10 = vector.shape_cast %9 : vector<1x4x32xf32> to vector<4x32xf32>
    %c12 = arith.constant 12 : index
    %c0_12 = arith.constant 0 : index
    %11 = vector.load %arg4[%c12, %c0_12] : memref<16x32xf32, #tpu.memory_space<vmem>>, vector<4x32xf32>
    tpu.vector_store %arg4[%c12, %c0_12], %10 {strides = array<i32>} : memref<16x32xf32, #tpu.memory_space<vmem>>, vector<4x32xf32>,
    %c0_13 = arith.constant 0 : index
    %c0_14 = arith.constant 0 : index
    %12 = vector.load %arg4[%c0_13, %c0_14] : memref<16x32xf32, #tpu.memory_space<vmem>>, vector<16x32xf32>
    %13 = tpu.transpose %12, [1, 0] : vector<16x32xf32> -> vector<32x16xf32>
    %c0_15 = arith.constant 0 : index
    %c0_16 = arith.constant 0 : index
    %c0_17 = arith.constant 0 : index
    %14 = vector.load %arg3[%c0_15, %c0_16, %c0_17] : memref<1x32x256xf32, #tpu.memory_space<vmem>>, vector<1x32x16xf32>
    %15 = vector.shape_cast %14 : vector<1x32x16xf32> to vector<32x16xf32>
    %16 = vector.shape_cast %13 : vector<32x16xf32> to vector<1x32x16xf32>
    tpu.vector_store %arg3[%c0_15, %c0_16, %c0_17], %16 {strides = array<i32>} : memref<1x32x256xf32, #tpu.memory_space<vmem>>, vector<1x32x16xf32>,
    %c0_18 = arith.constant 0 : index
    %c4_19 = arith.constant 4 : index
    %c0_20 = arith.constant 0 : index
    %17 = vector.load %arg2[%c0_18, %c4_19, %c0_20] : memref<1x256x32xf32, #tpu.memory_space<vmem>>, vector<1x4x32xf32>
    %18 = vector.shape_cast %17 : vector<1x4x32xf32> to vector<4x32xf32>
    %c0_21 = arith.constant 0 : index
    %c0_22 = arith.constant 0 : index
    %19 = vector.load %arg4[%c0_21, %c0_22] : memref<16x32xf32, #tpu.memory_space<vmem>>, vector<4x32xf32>
    tpu.vector_store %arg4[%c0_21, %c0_22], %18 {strides = array<i32>} : memref<16x32xf32, #tpu.memory_space<vmem>>, vector<4x32xf32>,
    %c0_23 = arith.constant 0 : index
    %c20 = arith.constant 20 : index
    %c0_24 = arith.constant 0 : index
    %20 = vector.load %arg2[%c0_23, %c20, %c0_24] : memref<1x256x32xf32, #tpu.memory_space<vmem>>, vector<1x4x32xf32>
    %21 = vector.shape_cast %20 : vector<1x4x32xf32> to vector<4x32xf32>
    %c4_25 = arith.constant 4 : index
    %c0_26 = arith.constant 0 : index
    %22 = vector.load %arg4[%c4_25, %c0_26] : memref<16x32xf32, #tpu.memory_space<vmem>>, vector<4x32xf32>
    tpu.vector_store %arg4[%c4_25, %c0_26], %21 {strides = array<i32>} : memref<16x32xf32, #tpu.memory_space<vmem>>, vector<4x32xf32>,
    %c0_27 = arith.constant 0 : index
    %c36 = arith.constant 36 : index
    %c0_28 = arith.constant 0 : index
    %23 = vector.load %arg2[%c0_27, %c36, %c0_28] : memref<1x256x32xf32, #tpu.memory_space<vmem>>, vector<1x4x32xf32>
    %24 = vector.shape_cast %23 : vector<1x4x32xf32> to vector<4x32xf32>
    %c8_29 = arith.constant 8 : index
    %c0_30 = arith.constant 0 : index
    %25 = vector.load %arg4[%c8_29, %c0_30] : memref<16x32xf32, #tpu.memory_space<vmem>>, vector<4x32xf32>
    tpu.vector_store %arg4[%c8_29, %c0_30], %24 {strides = array<i32>} : memref<16x32xf32, #tpu.memory_space<vmem>>, vector<4x32xf32>,
    %c0_31 = arith.constant 0 : index
    %c52 = arith.constant 52 : index
    %c0_32 = arith.constant 0 : index
    %26 = vector.load %arg2[%c0_31, %c52, %c0_32] : memref<1x256x32xf32, #tpu.memory_space<vmem>>, vector<1x4x32xf32>
    %27 = vector.shape_cast %26 : vector<1x4x32xf32> to vector<4x32xf32>
    %c12_33 = arith.constant 12 : index
    %c0_34 = arith.constant 0 : index
    %28 = vector.load %arg4[%c12_33, %c0_34] : memref<16x32xf32, #tpu.memory_space<vmem>>, vector<4x32xf32>
    tpu.vector_store %arg4[%c12_33, %c0_34], %27 {strides = array<i32>} : memref<16x32xf32, #tpu.memory_space<vmem>>, vector<4x32xf32>,
    %c0_35 = arith.constant 0 : index
    %c0_36 = arith.constant 0 : index
    %29 = vector.load %arg4[%c0_35, %c0_36] : memref<16x32xf32, #tpu.memory_space<vmem>>, vector<16x32xf32>
    %30 = tpu.transpose %29, [1, 0] : vector<16x32xf32> -> vector<32x16xf32>
    %c0_37 = arith.constant 0 : index
    %c0_38 = arith.constant 0 : index
    %c16_39 = arith.constant 16 : index
    %31 = vector.load %arg3[%c0_37, %c0_38, %c16_39] : memref<1x32x256xf32, #tpu.memory_space<vmem>>, vector<1x32x16xf32>
    %32 = vector.shape_cast %31 : vector<1x32x16xf32> to vector<32x16xf32>
    %33 = vector.shape_cast %30 : vector<32x16xf32> to vector<1x32x16xf32>
    tpu.vector_store %arg3[%c0_37, %c0_38, %c16_39], %33 {strides = array<i32>} : memref<1x32x256xf32, #tpu.memory_space<vmem>>, vector<1x32x16xf32>,
    %c0_40 = arith.constant 0 : index
    %c8_41 = arith.constant 8 : index
    %c0_42 = arith.constant 0 : index
    %34 = vector.load %arg2[%c0_40, %c8_41, %c0_42] : memref<1x256x32xf32, #tpu.memory_space<vmem>>, vector<1x4x32xf32>
    %35 = vector.shape_cast %34 : vector<1x4x32xf32> to vector<4x32xf32>
    %c0_43 = arith.constant 0 : index
    %c0_44 = arith.constant 0 : index
    %36 = vector.load %arg4[%c0_43, %c0_44] : memref<16x32xf32, #tpu.memory_space<vmem>>, vector<4x32xf32>
    tpu.vector_store %arg4[%c0_43, %c0_44], %35 {strides = array<i32>} : memref<16x32xf32, #tpu.memory_space<vmem>>, vector<4x32xf32>,
    %c0_45 = arith.constant 0 : index
    %c24 = arith.constant 24 : index
    %c0_46 = arith.constant 0 : index
    %37 = vector.load %arg2[%c0_45, %c24, %c0_46] : memref<1x256x32xf32, #tpu.memory_space<vmem>>, vector<1x4x32xf32>
    %38 = vector.shape_cast %37 : vector<1x4x32xf32> to vector<4x32xf32>
    %c4_47 = arith.constant 4 : index
    %c0_48 = arith.constant 0 : index
    %39 = vector.load %arg4[%c4_47, %c0_48] : memref<16x32xf32, #tpu.memory_space<vmem>>, vector<4x32xf32>
    tpu.vector_store %arg4[%c4_47, %c0_48], %38 {strides = array<i32>} : memref<16x32xf32, #tpu.memory_space<vmem>>, vector<4x32xf32>,
    %c0_49 = arith.constant 0 : index
    %c40 = arith.constant 40 : index
    %c0_50 = arith.constant 0 : index
    %40 = vector.load %arg2[%c0_49, %c40, %c0_50] : memref<1x256x32xf32, #tpu.memory_space<vmem>>, vector<1x4x32xf32>
    %41 = vector.shape_cast %40 : vector<1x4x32xf32> to vector<4x32xf32>
    %c8_51 = arith.constant 8 : index
    %c0_52 = arith.constant 0 : index
    %42 = vector.load %arg4[%c8_51, %c0_52] : memref<16x32xf32, #tpu.memory_space<vmem>>, vector<4x32xf32>
    tpu.vector_store %arg4[%c8_51, %c0_52], %41 {strides = array<i32>} : memref<16x32xf32, #tpu.memory_space<vmem>>, vector<4x32xf32>,
    %c0_53 = arith.constant 0 : index
    %c56 = arith.constant 56 : index
    %c0_54 = arith.constant 0 : index
    %43 = vector.load %arg2[%c0_53, %c56, %c0_54] : memref<1x256x32xf32, #tpu.memory_space<vmem>>, vector<1x4x32xf32>
    %44 = vector.shape_cast %43 : vector<1x4x32xf32> to vector<4x32xf32>
    %c12_55 = arith.constant 12 : index
    %c0_56 = arith.constant 0 : index
    %45 = vector.load %arg4[%c12_55, %c0_56] : memref<16x32xf32, #tpu.memory_space<vmem>>, vector<4x32xf32>
    tpu.vector_store %arg4[%c12_55, %c0_56], %44 {strides = array<i32>} : memref<16x32xf32, #tpu.memory_space<vmem>>, vector<4x32xf32>,
    %c0_57 = arith.constant 0 : index
    %c0_58 = arith.constant 0 : index
    %46 = vector.load %arg4[%c0_57, %c0_58] : memref<16x32xf32, #tpu.memory_space<vmem>>, vector<16x32xf32>
    %47 = tpu.transpose %46, [1, 0] : vector<16x32xf32> -> vector<32x16xf32>
    %c0_59 = arith.constant 0 : index
    %c0_60 = arith.constant 0 : index
    %c32_61 = arith.constant 32 : index
    %48 = vector.load %arg3[%c0_59, %c0_60, %c32_61] : memref<1x32x256xf32, #tpu.memory_space<vmem>>, vector<1x32x16xf32>
    %49 = vector.shape_cast %48 : vector<1x32x16xf32> to vector<32x16xf32>
    %50 = vector.shape_cast %47 : vector<32x16xf32> to vector<1x32x16xf32>
    tpu.vector_store %arg3[%c0_59, %c0_60, %c32_61], %50 {strides = array<i32>} : memref<1x32x256xf32, #tpu.memory_space<vmem>>, vector<1x32x16xf32>,
    %c0_62 = arith.constant 0 : index
    %c12_63 = arith.constant 12 : index
    %c0_64 = arith.constant 0 : index
    %51 = vector.load %arg2[%c0_62, %c12_63, %c0_64] : memref<1x256x32xf32, #tpu.memory_space<vmem>>, vector<1x4x32xf32>
    %52 = vector.shape_cast %51 : vector<1x4x32xf32> to vector<4x32xf32>
    %c0_65 = arith.constant 0 : index
    %c0_66 = arith.constant 0 : index
    %53 = vector.load %arg4[%c0_65, %c0_66] : memref<16x32xf32, #tpu.memory_space<vmem>>, vector<4x32xf32>
    tpu.vector_store %arg4[%c0_65, %c0_66], %52 {strides = array<i32>} : memref<16x32xf32, #tpu.memory_space<vmem>>, vector<4x32xf32>,
    %c0_67 = arith.constant 0 : index
    %c28 = arith.constant 28 : index
    %c0_68 = arith.constant 0 : index
    %54 = vector.load %arg2[%c0_67, %c28, %c0_68] : memref<1x256x32xf32, #tpu.memory_space<vmem>>, vector<1x4x32xf32>
    %55 = vector.shape_cast %54 : vector<1x4x32xf32> to vector<4x32xf32>
    %c4_69 = arith.constant 4 : index
    %c0_70 = arith.constant 0 : index
    %56 = vector.load %arg4[%c4_69, %c0_70] : memref<16x32xf32, #tpu.memory_space<vmem>>, vector<4x32xf32>
    tpu.vector_store %arg4[%c4_69, %c0_70], %55 {strides = array<i32>} : memref<16x32xf32, #tpu.memory_space<vmem>>, vector<4x32xf32>,
    %c0_71 = arith.constant 0 : index
    %c44 = arith.constant 44 : index
    %c0_72 = arith.constant 0 : index
    %57 = vector.load %arg2[%c0_71, %c44, %c0_72] : memref<1x256x32xf32, #tpu.memory_space<vmem>>, vector<1x4x32xf32>
    %58 = vector.shape_cast %57 : vector<1x4x32xf32> to vector<4x32xf32>
    %c8_73 = arith.constant 8 : index
    %c0_74 = arith.constant 0 : index
    %59 = vector.load %arg4[%c8_73, %c0_74] : memref<16x32xf32, #tpu.memory_space<vmem>>, vector<4x32xf32>
    tpu.vector_store %arg4[%c8_73, %c0_74], %58 {strides = array<i32>} : memref<16x32xf32, #tpu.memory_space<vmem>>, vector<4x32xf32>,
    %c0_75 = arith.constant 0 : index
    %c60 = arith.constant 60 : index
    %c0_76 = arith.constant 0 : index
    %60 = vector.load %arg2[%c0_75, %c60, %c0_76] : memref<1x256x32xf32, #tpu.memory_space<vmem>>, vector<1x4x32xf32>
    %61 = vector.shape_cast %60 : vector<1x4x32xf32> to vector<4x32xf32>
    %c12_77 = arith.constant 12 : index
    %c0_78 = arith.constant 0 : index
    %62 = vector.load %arg4[%c12_77, %c0_78] : memref<16x32xf32, #tpu.memory_space<vmem>>, vector<4x32xf32>
    tpu.vector_store %arg4[%c12_77, %c0_78], %61 {strides = array<i32>} : memref<16x32xf32, #tpu.memory_space<vmem>>, vector<4x32xf32>,
    %c0_79 = arith.constant 0 : index
    %c0_80 = arith.constant 0 : index
    %63 = vector.load %arg4[%c0_79, %c0_80] : memref<16x32xf32, #tpu.memory_space<vmem>>, vector<16x32xf32>
    %64 = tpu.transpose %63, [1, 0] : vector<16x32xf32> -> vector<32x16xf32>
    %c0_81 = arith.constant 0 : index
    %c0_82 = arith.constant 0 : index
    %c48_83 = arith.constant 48 : index
    %65 = vector.load %arg3[%c0_81, %c0_82, %c48_83] : memref<1x32x256xf32, #tpu.memory_space<vmem>>, vector<1x32x16xf32>
    %66 = vector.shape_cast %65 : vector<1x32x16xf32> to vector<32x16xf32>
    %67 = vector.shape_cast %64 : vector<32x16xf32> to vector<1x32x16xf32>
    tpu.vector_store %arg3[%c0_81, %c0_82, %c48_83], %67 {strides = array<i32>} : memref<1x32x256xf32, #tpu.memory_space<vmem>>, vector<1x32x16xf32>,
    %c0_84 = arith.constant 0 : index
    %c64 = arith.constant 64 : index
    %c0_85 = arith.constant 0 : index
    %68 = vector.load %arg2[%c0_84, %c64, %c0_85] : memref<1x256x32xf32, #tpu.memory_space<vmem>>, vector<1x4x32xf32>
    %69 = vector.shape_cast %68 : vector<1x4x32xf32> to vector<4x32xf32>
    %c0_86 = arith.constant 0 : index
    %c0_87 = arith.constant 0 : index
    %70 = vector.load %arg4[%c0_86, %c0_87] : memref<16x32xf32, #tpu.memory_space<vmem>>, vector<4x32xf32>
    tpu.vector_store %arg4[%c0_86, %c0_87], %69 {strides = array<i32>} : memref<16x32xf32, #tpu.memory_space<vmem>>, vector<4x32xf32>,
    %c0_88 = arith.constant 0 : index
    %c80 = arith.constant 80 : index
    %c0_89 = arith.constant 0 : index
    %71 = vector.load %arg2[%c0_88, %c80, %c0_89] : memref<1x256x32xf32, #tpu.memory_space<vmem>>, vector<1x4x32xf32>
    %72 = vector.shape_cast %71 : vector<1x4x32xf32> to vector<4x32xf32>
    %c4_90 = arith.constant 4 : index
    %c0_91 = arith.constant 0 : index
    %73 = vector.load %arg4[%c4_90, %c0_91] : memref<16x32xf32, #tpu.memory_space<vmem>>, vector<4x32xf32>
    tpu.vector_store %arg4[%c4_90, %c0_91], %72 {strides = array<i32>} : memref<16x32xf32, #tpu.memory_space<vmem>>, vector<4x32xf32>,
    %c0_92 = arith.constant 0 : index
    %c96 = arith.constant 96 : index
    %c0_93 = arith.constant 0 : index
    %74 = vector.load %arg2[%c0_92, %c96, %c0_93] : memref<1x256x32xf32, #tpu.memory_space<vmem>>, vector<1x4x32xf32>
    %75 = vector.shape_cast %74 : vector<1x4x32xf32> to vector<4x32xf32>
    %c8_94 = arith.constant 8 : index
    %c0_95 = arith.constant 0 : index
    %76 = vector.load %arg4[%c8_94, %c0_95] : memref<16x32xf32, #tpu.memory_space<vmem>>, vector<4x32xf32>
    tpu.vector_store %arg4[%c8_94, %c0_95], %75 {strides = array<i32>} : memref<16x32xf32, #tpu.memory_space<vmem>>, vector<4x32xf32>,
    %c0_96 = arith.constant 0 : index
    %c112 = arith.constant 112 : index
    %c0_97 = arith.constant 0 : index
    %77 = vector.load %arg2[%c0_96, %c112, %c0_97] : memref<1x256x32xf32, #tpu.memory_space<vmem>>, vector<1x4x32xf32>
    %78 = vector.shape_cast %77 : vector<1x4x32xf32> to vector<4x32xf32>
    %c12_98 = arith.constant 12 : index
    %c0_99 = arith.constant 0 : index
    %79 = vector.load %arg4[%c12_98, %c0_99] : memref<16x32xf32, #tpu.memory_space<vmem>>, vector<4x32xf32>
    tpu.vector_store %arg4[%c12_98, %c0_99], %78 {strides = array<i32>} : memref<16x32xf32, #tpu.memory_space<vmem>>, vector<4x32xf32>,
    %c0_100 = arith.constant 0 : index
    %c0_101 = arith.constant 0 : index
    %80 = vector.load %arg4[%c0_100, %c0_101] : memref<16x32xf32, #tpu.memory_space<vmem>>, vector<16x32xf32>
    %81 = tpu.transpose %80, [1, 0] : vector<16x32xf32> -> vector<32x16xf32>
    %c0_102 = arith.constant 0 : index
    %c0_103 = arith.constant 0 : index
    %c64_104 = arith.constant 64 : index
    %82 = vector.load %arg3[%c0_102, %c0_103, %c64_104] : memref<1x32x256xf32, #tpu.memory_space<vmem>>, vector<1x32x16xf32>
    %83 = vector.shape_cast %82 : vector<1x32x16xf32> to vector<32x16xf32>
    %84 = vector.shape_cast %81 : vector<32x16xf32> to vector<1x32x16xf32>
    tpu.vector_store %arg3[%c0_102, %c0_103, %c64_104], %84 {strides = array<i32>} : memref<1x32x256xf32, #tpu.memory_space<vmem>>, vector<1x32x16xf32>,
    %c0_105 = arith.constant 0 : index
    %c68 = arith.constant 68 : index
    %c0_106 = arith.constant 0 : index
    %85 = vector.load %arg2[%c0_105, %c68, %c0_106] : memref<1x256x32xf32, #tpu.memory_space<vmem>>, vector<1x4x32xf32>
    %86 = vector.shape_cast %85 : vector<1x4x32xf32> to vector<4x32xf32>
    %c0_107 = arith.constant 0 : index
    %c0_108 = arith.constant 0 : index
    %87 = vector.load %arg4[%c0_107, %c0_108] : memref<16x32xf32, #tpu.memory_space<vmem>>, vector<4x32xf32>
    tpu.vector_store %arg4[%c0_107, %c0_108], %86 {strides = array<i32>} : memref<16x32xf32, #tpu.memory_space<vmem>>, vector<4x32xf32>,
    %c0_109 = arith.constant 0 : index
    %c84 = arith.constant 84 : index
    %c0_110 = arith.constant 0 : index
    %88 = vector.load %arg2[%c0_109, %c84, %c0_110] : memref<1x256x32xf32, #tpu.memory_space<vmem>>, vector<1x4x32xf32>
    %89 = vector.shape_cast %88 : vector<1x4x32xf32> to vector<4x32xf32>
    %c4_111 = arith.constant 4 : index
    %c0_112 = arith.constant 0 : index
    %90 = vector.load %arg4[%c4_111, %c0_112] : memref<16x32xf32, #tpu.memory_space<vmem>>, vector<4x32xf32>
    tpu.vector_store %arg4[%c4_111, %c0_112], %89 {strides = array<i32>} : memref<16x32xf32, #tpu.memory_space<vmem>>, vector<4x32xf32>,
    %c0_113 = arith.constant 0 : index
    %c100 = arith.constant 100 : index
    %c0_114 = arith.constant 0 : index
    %91 = vector.load %arg2[%c0_113, %c100, %c0_114] : memref<1x256x32xf32, #tpu.memory_space<vmem>>, vector<1x4x32xf32>
    %92 = vector.shape_cast %91 : vector<1x4x32xf32> to vector<4x32xf32>
    %c8_115 = arith.constant 8 : index
    %c0_116 = arith.constant 0 : index
    %93 = vector.load %arg4[%c8_115, %c0_116] : memref<16x32xf32, #tpu.memory_space<vmem>>, vector<4x32xf32>
    tpu.vector_store %arg4[%c8_115, %c0_116], %92 {strides = array<i32>} : memref<16x32xf32, #tpu.memory_space<vmem>>, vector<4x32xf32>,
    %c0_117 = arith.constant 0 : index
    %c116 = arith.constant 116 : index
    %c0_118 = arith.constant 0 : index
    %94 = vector.load %arg2[%c0_117, %c116, %c0_118] : memref<1x256x32xf32, #tpu.memory_space<vmem>>, vector<1x4x32xf32>
    %95 = vector.shape_cast %94 : vector<1x4x32xf32> to vector<4x32xf32>
    %c12_119 = arith.constant 12 : index
    %c0_120 = arith.constant 0 : index
    %96 = vector.load %arg4[%c12_119, %c0_120] : memref<16x32xf32, #tpu.memory_space<vmem>>, vector<4x32xf32>
    tpu.vector_store %arg4[%c12_119, %c0_120], %95 {strides = array<i32>} : memref<16x32xf32, #tpu.memory_space<vmem>>, vector<4x32xf32>,
    %c0_121 = arith.constant 0 : index
    %c0_122 = arith.constant 0 : index
    %97 = vector.load %arg4[%c0_121, %c0_122] : memref<16x32xf32, #tpu.memory_space<vmem>>, vector<16x32xf32>
    %98 = tpu.transpose %97, [1, 0] : vector<16x32xf32> -> vector<32x16xf32>
    %c0_123 = arith.constant 0 : index
    %c0_124 = arith.constant 0 : index
    %c80_125 = arith.constant 80 : index
    %99 = vector.load %arg3[%c0_123, %c0_124, %c80_125] : memref<1x32x256xf32, #tpu.memory_space<vmem>>, vector<1x32x16xf32>
    %100 = vector.shape_cast %99 : vector<1x32x16xf32> to vector<32x16xf32>
    %101 = vector.shape_cast %98 : vector<32x16xf32> to vector<1x32x16xf32>
    tpu.vector_store %arg3[%c0_123, %c0_124, %c80_125], %101 {strides = array<i32>} : memref<1x32x256xf32, #tpu.memory_space<vmem>>, vector<1x32x16xf32>,
    %c0_126 = arith.constant 0 : index
    %c72 = arith.constant 72 : index
    %c0_127 = arith.constant 0 : index
    %102 = vector.load %arg2[%c0_126, %c72, %c0_127] : memref<1x256x32xf32, #tpu.memory_space<vmem>>, vector<1x4x32xf32>
    %103 = vector.shape_cast %102 : vector<1x4x32xf32> to vector<4x32xf32>
    %c0_128 = arith.constant 0 : index
    %c0_129 = arith.constant 0 : index
    %104 = vector.load %arg4[%c0_128, %c0_129] : memref<16x32xf32, #tpu.memory_space<vmem>>, vector<4x32xf32>
    tpu.vector_store %arg4[%c0_128, %c0_129], %103 {strides = array<i32>} : memref<16x32xf32, #tpu.memory_space<vmem>>, vector<4x32xf32>,
    %c0_130 = arith.constant 0 : index
    %c88 = arith.constant 88 : index
    %c0_131 = arith.constant 0 : index
    %105 = vector.load %arg2[%c0_130, %c88, %c0_131] : memref<1x256x32xf32, #tpu.memory_space<vmem>>, vector<1x4x32xf32>
    %106 = vector.shape_cast %105 : vector<1x4x32xf32> to vector<4x32xf32>
    %c4_132 = arith.constant 4 : index
    %c0_133 = arith.constant 0 : index
    %107 = vector.load %arg4[%c4_132, %c0_133] : memref<16x32xf32, #tpu.memory_space<vmem>>, vector<4x32xf32>
    tpu.vector_store %arg4[%c4_132, %c0_133], %106 {strides = array<i32>} : memref<16x32xf32, #tpu.memory_space<vmem>>, vector<4x32xf32>,
    %c0_134 = arith.constant 0 : index
    %c104 = arith.constant 104 : index
    %c0_135 = arith.constant 0 : index
    %108 = vector.load %arg2[%c0_134, %c104, %c0_135] : memref<1x256x32xf32, #tpu.memory_space<vmem>>, vector<1x4x32xf32>
    %109 = vector.shape_cast %108 : vector<1x4x32xf32> to vector<4x32xf32>
    %c8_136 = arith.constant 8 : index
    %c0_137 = arith.constant 0 : index
    %110 = vector.load %arg4[%c8_136, %c0_137] : memref<16x32xf32, #tpu.memory_space<vmem>>, vector<4x32xf32>
    tpu.vector_store %arg4[%c8_136, %c0_137], %109 {strides = array<i32>} : memref<16x32xf32, #tpu.memory_space<vmem>>, vector<4x32xf32>,
    %c0_138 = arith.constant 0 : index
    %c120 = arith.constant 120 : index
    %c0_139 = arith.constant 0 : index
    %111 = vector.load %arg2[%c0_138, %c120, %c0_139] : memref<1x256x32xf32, #tpu.memory_space<vmem>>, vector<1x4x32xf32>
    %112 = vector.shape_cast %111 : vector<1x4x32xf32> to vector<4x32xf32>
    %c12_140 = arith.constant 12 : index
    %c0_141 = arith.constant 0 : index
    %113 = vector.load %arg4[%c12_140, %c0_141] : memref<16x32xf32, #tpu.memory_space<vmem>>, vector<4x32xf32>
    tpu.vector_store %arg4[%c12_140, %c0_141], %112 {strides = array<i32>} : memref<16x32xf32, #tpu.memory_space<vmem>>, vector<4x32xf32>,
    %c0_142 = arith.constant 0 : index
    %c0_143 = arith.constant 0 : index
    %114 = vector.load %arg4[%c0_142, %c0_143] : memref<16x32xf32, #tpu.memory_space<vmem>>, vector<16x32xf32>
    %115 = tpu.transpose %114, [1, 0] : vector<16x32xf32> -> vector<32x16xf32>
    %c0_144 = arith.constant 0 : index
    %c0_145 = arith.constant 0 : index
    %c96_146 = arith.constant 96 : index
    %116 = vector.load %arg3[%c0_144, %c0_145, %c96_146] : memref<1x32x256xf32, #tpu.memory_space<vmem>>, vector<1x32x16xf32>
    %117 = vector.shape_cast %116 : vector<1x32x16xf32> to vector<32x16xf32>
    %118 = vector.shape_cast %115 : vector<32x16xf32> to vector<1x32x16xf32>
    tpu.vector_store %arg3[%c0_144, %c0_145, %c96_146], %118 {strides = array<i32>} : memref<1x32x256xf32, #tpu.memory_space<vmem>>, vector<1x32x16xf32>,
    %c0_147 = arith.constant 0 : index
    %c76 = arith.constant 76 : index
    %c0_148 = arith.constant 0 : index
    %119 = vector.load %arg2[%c0_147, %c76, %c0_148] : memref<1x256x32xf32, #tpu.memory_space<vmem>>, vector<1x4x32xf32>
    %120 = vector.shape_cast %119 : vector<1x4x32xf32> to vector<4x32xf32>
    %c0_149 = arith.constant 0 : index
    %c0_150 = arith.constant 0 : index
    %121 = vector.load %arg4[%c0_149, %c0_150] : memref<16x32xf32, #tpu.memory_space<vmem>>, vector<4x32xf32>
    tpu.vector_store %arg4[%c0_149, %c0_150], %120 {strides = array<i32>} : memref<16x32xf32, #tpu.memory_space<vmem>>, vector<4x32xf32>,
    %c0_151 = arith.constant 0 : index
    %c92 = arith.constant 92 : index
    %c0_152 = arith.constant 0 : index
    %122 = vector.load %arg2[%c0_151, %c92, %c0_152] : memref<1x256x32xf32, #tpu.memory_space<vmem>>, vector<1x4x32xf32>
    %123 = vector.shape_cast %122 : vector<1x4x32xf32> to vector<4x32xf32>
    %c4_153 = arith.constant 4 : index
    %c0_154 = arith.constant 0 : index
    %124 = vector.load %arg4[%c4_153, %c0_154] : memref<16x32xf32, #tpu.memory_space<vmem>>, vector<4x32xf32>
    tpu.vector_store %arg4[%c4_153, %c0_154], %123 {strides = array<i32>} : memref<16x32xf32, #tpu.memory_space<vmem>>, vector<4x32xf32>,
    %c0_155 = arith.constant 0 : index
    %c108 = arith.constant 108 : index
    %c0_156 = arith.constant 0 : index
    %125 = vector.load %arg2[%c0_155, %c108, %c0_156] : memref<1x256x32xf32, #tpu.memory_space<vmem>>, vector<1x4x32xf32>
    %126 = vector.shape_cast %125 : vector<1x4x32xf32> to vector<4x32xf32>
    %c8_157 = arith.constant 8 : index
    %c0_158 = arith.constant 0 : index
    %127 = vector.load %arg4[%c8_157, %c0_158] : memref<16x32xf32, #tpu.memory_space<vmem>>, vector<4x32xf32>
    tpu.vector_store %arg4[%c8_157, %c0_158], %126 {strides = array<i32>} : memref<16x32xf32, #tpu.memory_space<vmem>>, vector<4x32xf32>,
    %c0_159 = arith.constant 0 : index
    %c124 = arith.constant 124 : index
    %c0_160 = arith.constant 0 : index
    %128 = vector.load %arg2[%c0_159, %c124, %c0_160] : memref<1x256x32xf32, #tpu.memory_space<vmem>>, vector<1x4x32xf32>
    %129 = vector.shape_cast %128 : vector<1x4x32xf32> to vector<4x32xf32>
    %c12_161 = arith.constant 12 : index
    %c0_162 = arith.constant 0 : index
    %130 = vector.load %arg4[%c12_161, %c0_162] : memref<16x32xf32, #tpu.memory_space<vmem>>, vector<4x32xf32>
    tpu.vector_store %arg4[%c12_161, %c0_162], %129 {strides = array<i32>} : memref<16x32xf32, #tpu.memory_space<vmem>>, vector<4x32xf32>,
    %c0_163 = arith.constant 0 : index
    %c0_164 = arith.constant 0 : index
    %131 = vector.load %arg4[%c0_163, %c0_164] : memref<16x32xf32, #tpu.memory_space<vmem>>, vector<16x32xf32>
    %132 = tpu.transpose %131, [1, 0] : vector<16x32xf32> -> vector<32x16xf32>
    %c0_165 = arith.constant 0 : index
    %c0_166 = arith.constant 0 : index
    %c112_167 = arith.constant 112 : index
    %133 = vector.load %arg3[%c0_165, %c0_166, %c112_167] : memref<1x32x256xf32, #tpu.memory_space<vmem>>, vector<1x32x16xf32>
    %134 = vector.shape_cast %133 : vector<1x32x16xf32> to vector<32x16xf32>
    %135 = vector.shape_cast %132 : vector<32x16xf32> to vector<1x32x16xf32>
    tpu.vector_store %arg3[%c0_165, %c0_166, %c112_167], %135 {strides = array<i32>} : memref<1x32x256xf32, #tpu.memory_space<vmem>>, vector<1x32x16xf32>,
    %c0_168 = arith.constant 0 : index
    %c128 = arith.constant 128 : index
    %c0_169 = arith.constant 0 : index
    %136 = vector.load %arg2[%c0_168, %c128, %c0_169] : memref<1x256x32xf32, #tpu.memory_space<vmem>>, vector<1x4x32xf32>
    %137 = vector.shape_cast %136 : vector<1x4x32xf32> to vector<4x32xf32>
    %c0_170 = arith.constant 0 : index
    %c0_171 = arith.constant 0 : index
    %138 = vector.load %arg4[%c0_170, %c0_171] : memref<16x32xf32, #tpu.memory_space<vmem>>, vector<4x32xf32>
    tpu.vector_store %arg4[%c0_170, %c0_171], %137 {strides = array<i32>} : memref<16x32xf32, #tpu.memory_space<vmem>>, vector<4x32xf32>,
    %c0_172 = arith.constant 0 : index
    %c144 = arith.constant 144 : index
    %c0_173 = arith.constant 0 : index
    %139 = vector.load %arg2[%c0_172, %c144, %c0_173] : memref<1x256x32xf32, #tpu.memory_space<vmem>>, vector<1x4x32xf32>
    %140 = vector.shape_cast %139 : vector<1x4x32xf32> to vector<4x32xf32>
    %c4_174 = arith.constant 4 : index
    %c0_175 = arith.constant 0 : index
    %141 = vector.load %arg4[%c4_174, %c0_175] : memref<16x32xf32, #tpu.memory_space<vmem>>, vector<4x32xf32>
    tpu.vector_store %arg4[%c4_174, %c0_175], %140 {strides = array<i32>} : memref<16x32xf32, #tpu.memory_space<vmem>>, vector<4x32xf32>,
    %c0_176 = arith.constant 0 : index
    %c160 = arith.constant 160 : index
    %c0_177 = arith.constant 0 : index
    %142 = vector.load %arg2[%c0_176, %c160, %c0_177] : memref<1x256x32xf32, #tpu.memory_space<vmem>>, vector<1x4x32xf32>
    %143 = vector.shape_cast %142 : vector<1x4x32xf32> to vector<4x32xf32>
    %c8_178 = arith.constant 8 : index
    %c0_179 = arith.constant 0 : index
    %144 = vector.load %arg4[%c8_178, %c0_179] : memref<16x32xf32, #tpu.memory_space<vmem>>, vector<4x32xf32>
    tpu.vector_store %arg4[%c8_178, %c0_179], %143 {strides = array<i32>} : memref<16x32xf32, #tpu.memory_space<vmem>>, vector<4x32xf32>,
    %c0_180 = arith.constant 0 : index
    %c176 = arith.constant 176 : index
    %c0_181 = arith.constant 0 : index
    %145 = vector.load %arg2[%c0_180, %c176, %c0_181] : memref<1x256x32xf32, #tpu.memory_space<vmem>>, vector<1x4x32xf32>
    %146 = vector.shape_cast %145 : vector<1x4x32xf32> to vector<4x32xf32>
    %c12_182 = arith.constant 12 : index
    %c0_183 = arith.constant 0 : index
    %147 = vector.load %arg4[%c12_182, %c0_183] : memref<16x32xf32, #tpu.memory_space<vmem>>, vector<4x32xf32>
    tpu.vector_store %arg4[%c12_182, %c0_183], %146 {strides = array<i32>} : memref<16x32xf32, #tpu.memory_space<vmem>>, vector<4x32xf32>,
    %c0_184 = arith.constant 0 : index
    %c0_185 = arith.constant 0 : index
    %148 = vector.load %arg4[%c0_184, %c0_185] : memref<16x32xf32, #tpu.memory_space<vmem>>, vector<16x32xf32>
    %149 = tpu.transpose %148, [1, 0] : vector<16x32xf32> -> vector<32x16xf32>
    %c0_186 = arith.constant 0 : index
    %c0_187 = arith.constant 0 : index
    %c128_188 = arith.constant 128 : index
    %150 = vector.load %arg3[%c0_186, %c0_187, %c128_188] : memref<1x32x256xf32, #tpu.memory_space<vmem>>, vector<1x32x16xf32>
    %151 = vector.shape_cast %150 : vector<1x32x16xf32> to vector<32x16xf32>
    %152 = vector.shape_cast %149 : vector<32x16xf32> to vector<1x32x16xf32>
    tpu.vector_store %arg3[%c0_186, %c0_187, %c128_188], %152 {strides = array<i32>} : memref<1x32x256xf32, #tpu.memory_space<vmem>>, vector<1x32x16xf32>,
    %c0_189 = arith.constant 0 : index
    %c132 = arith.constant 132 : index
    %c0_190 = arith.constant 0 : index
    %153 = vector.load %arg2[%c0_189, %c132, %c0_190] : memref<1x256x32xf32, #tpu.memory_space<vmem>>, vector<1x4x32xf32>
    %154 = vector.shape_cast %153 : vector<1x4x32xf32> to vector<4x32xf32>
    %c0_191 = arith.constant 0 : index
    %c0_192 = arith.constant 0 : index
    %155 = vector.load %arg4[%c0_191, %c0_192] : memref<16x32xf32, #tpu.memory_space<vmem>>, vector<4x32xf32>
    tpu.vector_store %arg4[%c0_191, %c0_192], %154 {strides = array<i32>} : memref<16x32xf32, #tpu.memory_space<vmem>>, vector<4x32xf32>,
    %c0_193 = arith.constant 0 : index
    %c148 = arith.constant 148 : index
    %c0_194 = arith.constant 0 : index
    %156 = vector.load %arg2[%c0_193, %c148, %c0_194] : memref<1x256x32xf32, #tpu.memory_space<vmem>>, vector<1x4x32xf32>
    %157 = vector.shape_cast %156 : vector<1x4x32xf32> to vector<4x32xf32>
    %c4_195 = arith.constant 4 : index
    %c0_196 = arith.constant 0 : index
    %158 = vector.load %arg4[%c4_195, %c0_196] : memref<16x32xf32, #tpu.memory_space<vmem>>, vector<4x32xf32>
    tpu.vector_store %arg4[%c4_195, %c0_196], %157 {strides = array<i32>} : memref<16x32xf32, #tpu.memory_space<vmem>>, vector<4x32xf32>,
    %c0_197 = arith.constant 0 : index
    %c164 = arith.constant 164 : index
    %c0_198 = arith.constant 0 : index
    %159 = vector.load %arg2[%c0_197, %c164, %c0_198] : memref<1x256x32xf32, #tpu.memory_space<vmem>>, vector<1x4x32xf32>
    %160 = vector.shape_cast %159 : vector<1x4x32xf32> to vector<4x32xf32>
    %c8_199 = arith.constant 8 : index
    %c0_200 = arith.constant 0 : index
    %161 = vector.load %arg4[%c8_199, %c0_200] : memref<16x32xf32, #tpu.memory_space<vmem>>, vector<4x32xf32>
    tpu.vector_store %arg4[%c8_199, %c0_200], %160 {strides = array<i32>} : memref<16x32xf32, #tpu.memory_space<vmem>>, vector<4x32xf32>,
    %c0_201 = arith.constant 0 : index
    %c180 = arith.constant 180 : index
    %c0_202 = arith.constant 0 : index
    %162 = vector.load %arg2[%c0_201, %c180, %c0_202] : memref<1x256x32xf32, #tpu.memory_space<vmem>>, vector<1x4x32xf32>
    %163 = vector.shape_cast %162 : vector<1x4x32xf32> to vector<4x32xf32>
    %c12_203 = arith.constant 12 : index
    %c0_204 = arith.constant 0 : index
    %164 = vector.load %arg4[%c12_203, %c0_204] : memref<16x32xf32, #tpu.memory_space<vmem>>, vector<4x32xf32>
    tpu.vector_store %arg4[%c12_203, %c0_204], %163 {strides = array<i32>} : memref<16x32xf32, #tpu.memory_space<vmem>>, vector<4x32xf32>,
    %c0_205 = arith.constant 0 : index
    %c0_206 = arith.constant 0 : index
    %165 = vector.load %arg4[%c0_205, %c0_206] : memref<16x32xf32, #tpu.memory_space<vmem>>, vector<16x32xf32>
    %166 = tpu.transpose %165, [1, 0] : vector<16x32xf32> -> vector<32x16xf32>
    %c0_207 = arith.constant 0 : index
    %c0_208 = arith.constant 0 : index
    %c144_209 = arith.constant 144 : index
    %167 = vector.load %arg3[%c0_207, %c0_208, %c144_209] : memref<1x32x256xf32, #tpu.memory_space<vmem>>, vector<1x32x16xf32>
    %168 = vector.shape_cast %167 : vector<1x32x16xf32> to vector<32x16xf32>
    %169 = vector.shape_cast %166 : vector<32x16xf32> to vector<1x32x16xf32>
    tpu.vector_store %arg3[%c0_207, %c0_208, %c144_209], %169 {strides = array<i32>} : memref<1x32x256xf32, #tpu.memory_space<vmem>>, vector<1x32x16xf32>,
    %c0_210 = arith.constant 0 : index
    %c136 = arith.constant 136 : index
    %c0_211 = arith.constant 0 : index
    %170 = vector.load %arg2[%c0_210, %c136, %c0_211] : memref<1x256x32xf32, #tpu.memory_space<vmem>>, vector<1x4x32xf32>
    %171 = vector.shape_cast %170 : vector<1x4x32xf32> to vector<4x32xf32>
    %c0_212 = arith.constant 0 : index
    %c0_213 = arith.constant 0 : index
    %172 = vector.load %arg4[%c0_212, %c0_213] : memref<16x32xf32, #tpu.memory_space<vmem>>, vector<4x32xf32>
    tpu.vector_store %arg4[%c0_212, %c0_213], %171 {strides = array<i32>} : memref<16x32xf32, #tpu.memory_space<vmem>>, vector<4x32xf32>,
    %c0_214 = arith.constant 0 : index
    %c152 = arith.constant 152 : index
    %c0_215 = arith.constant 0 : index
    %173 = vector.load %arg2[%c0_214, %c152, %c0_215] : memref<1x256x32xf32, #tpu.memory_space<vmem>>, vector<1x4x32xf32>
    %174 = vector.shape_cast %173 : vector<1x4x32xf32> to vector<4x32xf32>
    %c4_216 = arith.constant 4 : index
    %c0_217 = arith.constant 0 : index
    %175 = vector.load %arg4[%c4_216, %c0_217] : memref<16x32xf32, #tpu.memory_space<vmem>>, vector<4x32xf32>
    tpu.vector_store %arg4[%c4_216, %c0_217], %174 {strides = array<i32>} : memref<16x32xf32, #tpu.memory_space<vmem>>, vector<4x32xf32>,
    %c0_218 = arith.constant 0 : index
    %c168 = arith.constant 168 : index
    %c0_219 = arith.constant 0 : index
    %176 = vector.load %arg2[%c0_218, %c168, %c0_219] : memref<1x256x32xf32, #tpu.memory_space<vmem>>, vector<1x4x32xf32>
    %177 = vector.shape_cast %176 : vector<1x4x32xf32> to vector<4x32xf32>
    %c8_220 = arith.constant 8 : index
    %c0_221 = arith.constant 0 : index
    %178 = vector.load %arg4[%c8_220, %c0_221] : memref<16x32xf32, #tpu.memory_space<vmem>>, vector<4x32xf32>
    tpu.vector_store %arg4[%c8_220, %c0_221], %177 {strides = array<i32>} : memref<16x32xf32, #tpu.memory_space<vmem>>, vector<4x32xf32>,
    %c0_222 = arith.constant 0 : index
    %c184 = arith.constant 184 : index
    %c0_223 = arith.constant 0 : index
    %179 = vector.load %arg2[%c0_222, %c184, %c0_223] : memref<1x256x32xf32, #tpu.memory_space<vmem>>, vector<1x4x32xf32>
    %180 = vector.shape_cast %179 : vector<1x4x32xf32> to vector<4x32xf32>
    %c12_224 = arith.constant 12 : index
    %c0_225 = arith.constant 0 : index
    %181 = vector.load %arg4[%c12_224, %c0_225] : memref<16x32xf32, #tpu.memory_space<vmem>>, vector<4x32xf32>
    tpu.vector_store %arg4[%c12_224, %c0_225], %180 {strides = array<i32>} : memref<16x32xf32, #tpu.memory_space<vmem>>, vector<4x32xf32>,
    %c0_226 = arith.constant 0 : index
    %c0_227 = arith.constant 0 : index
    %182 = vector.load %arg4[%c0_226, %c0_227] : memref<16x32xf32, #tpu.memory_space<vmem>>, vector<16x32xf32>
    %183 = tpu.transpose %182, [1, 0] : vector<16x32xf32> -> vector<32x16xf32>
    %c0_228 = arith.constant 0 : index
    %c0_229 = arith.constant 0 : index
    %c160_230 = arith.constant 160 : index
    %184 = vector.load %arg3[%c0_228, %c0_229, %c160_230] : memref<1x32x256xf32, #tpu.memory_space<vmem>>, vector<1x32x16xf32>
    %185 = vector.shape_cast %184 : vector<1x32x16xf32> to vector<32x16xf32>
    %186 = vector.shape_cast %183 : vector<32x16xf32> to vector<1x32x16xf32>
    tpu.vector_store %arg3[%c0_228, %c0_229, %c160_230], %186 {strides = array<i32>} : memref<1x32x256xf32, #tpu.memory_space<vmem>>, vector<1x32x16xf32>,
    %c0_231 = arith.constant 0 : index
    %c140 = arith.constant 140 : index
    %c0_232 = arith.constant 0 : index
    %187 = vector.load %arg2[%c0_231, %c140, %c0_232] : memref<1x256x32xf32, #tpu.memory_space<vmem>>, vector<1x4x32xf32>
    %188 = vector.shape_cast %187 : vector<1x4x32xf32> to vector<4x32xf32>
    %c0_233 = arith.constant 0 : index
    %c0_234 = arith.constant 0 : index
    %189 = vector.load %arg4[%c0_233, %c0_234] : memref<16x32xf32, #tpu.memory_space<vmem>>, vector<4x32xf32>
    tpu.vector_store %arg4[%c0_233, %c0_234], %188 {strides = array<i32>} : memref<16x32xf32, #tpu.memory_space<vmem>>, vector<4x32xf32>,
    %c0_235 = arith.constant 0 : index
    %c156 = arith.constant 156 : index
    %c0_236 = arith.constant 0 : index
    %190 = vector.load %arg2[%c0_235, %c156, %c0_236] : memref<1x256x32xf32, #tpu.memory_space<vmem>>, vector<1x4x32xf32>
    %191 = vector.shape_cast %190 : vector<1x4x32xf32> to vector<4x32xf32>
    %c4_237 = arith.constant 4 : index
    %c0_238 = arith.constant 0 : index
    %192 = vector.load %arg4[%c4_237, %c0_238] : memref<16x32xf32, #tpu.memory_space<vmem>>, vector<4x32xf32>
    tpu.vector_store %arg4[%c4_237, %c0_238], %191 {strides = array<i32>} : memref<16x32xf32, #tpu.memory_space<vmem>>, vector<4x32xf32>,
    %c0_239 = arith.constant 0 : index
    %c172 = arith.constant 172 : index
    %c0_240 = arith.constant 0 : index
    %193 = vector.load %arg2[%c0_239, %c172, %c0_240] : memref<1x256x32xf32, #tpu.memory_space<vmem>>, vector<1x4x32xf32>
    %194 = vector.shape_cast %193 : vector<1x4x32xf32> to vector<4x32xf32>
    %c8_241 = arith.constant 8 : index
    %c0_242 = arith.constant 0 : index
    %195 = vector.load %arg4[%c8_241, %c0_242] : memref<16x32xf32, #tpu.memory_space<vmem>>, vector<4x32xf32>
    tpu.vector_store %arg4[%c8_241, %c0_242], %194 {strides = array<i32>} : memref<16x32xf32, #tpu.memory_space<vmem>>, vector<4x32xf32>,
    %c0_243 = arith.constant 0 : index
    %c188 = arith.constant 188 : index
    %c0_244 = arith.constant 0 : index
    %196 = vector.load %arg2[%c0_243, %c188, %c0_244] : memref<1x256x32xf32, #tpu.memory_space<vmem>>, vector<1x4x32xf32>
    %197 = vector.shape_cast %196 : vector<1x4x32xf32> to vector<4x32xf32>
    %c12_245 = arith.constant 12 : index
    %c0_246 = arith.constant 0 : index
    %198 = vector.load %arg4[%c12_245, %c0_246] : memref<16x32xf32, #tpu.memory_space<vmem>>, vector<4x32xf32>
    tpu.vector_store %arg4[%c12_245, %c0_246], %197 {strides = array<i32>} : memref<16x32xf32, #tpu.memory_space<vmem>>, vector<4x32xf32>,
    %c0_247 = arith.constant 0 : index
    %c0_248 = arith.constant 0 : index
    %199 = vector.load %arg4[%c0_247, %c0_248] : memref<16x32xf32, #tpu.memory_space<vmem>>, vector<16x32xf32>
    %200 = tpu.transpose %199, [1, 0] : vector<16x32xf32> -> vector<32x16xf32>
    %c0_249 = arith.constant 0 : index
    %c0_250 = arith.constant 0 : index
    %c176_251 = arith.constant 176 : index
    %201 = vector.load %arg3[%c0_249, %c0_250, %c176_251] : memref<1x32x256xf32, #tpu.memory_space<vmem>>, vector<1x32x16xf32>
    %202 = vector.shape_cast %201 : vector<1x32x16xf32> to vector<32x16xf32>
    %203 = vector.shape_cast %200 : vector<32x16xf32> to vector<1x32x16xf32>
    tpu.vector_store %arg3[%c0_249, %c0_250, %c176_251], %203 {strides = array<i32>} : memref<1x32x256xf32, #tpu.memory_space<vmem>>, vector<1x32x16xf32>,
    %c0_252 = arith.constant 0 : index
    %c192 = arith.constant 192 : index
    %c0_253 = arith.constant 0 : index
    %204 = vector.load %arg2[%c0_252, %c192, %c0_253] : memref<1x256x32xf32, #tpu.memory_space<vmem>>, vector<1x4x32xf32>
    %205 = vector.shape_cast %204 : vector<1x4x32xf32> to vector<4x32xf32>
    %c0_254 = arith.constant 0 : index
    %c0_255 = arith.constant 0 : index
    %206 = vector.load %arg4[%c0_254, %c0_255] : memref<16x32xf32, #tpu.memory_space<vmem>>, vector<4x32xf32>
    tpu.vector_store %arg4[%c0_254, %c0_255], %205 {strides = array<i32>} : memref<16x32xf32, #tpu.memory_space<vmem>>, vector<4x32xf32>,
    %c0_256 = arith.constant 0 : index
    %c208 = arith.constant 208 : index
    %c0_257 = arith.constant 0 : index
    %207 = vector.load %arg2[%c0_256, %c208, %c0_257] : memref<1x256x32xf32, #tpu.memory_space<vmem>>, vector<1x4x32xf32>
    %208 = vector.shape_cast %207 : vector<1x4x32xf32> to vector<4x32xf32>
    %c4_258 = arith.constant 4 : index
    %c0_259 = arith.constant 0 : index
    %209 = vector.load %arg4[%c4_258, %c0_259] : memref<16x32xf32, #tpu.memory_space<vmem>>, vector<4x32xf32>
    tpu.vector_store %arg4[%c4_258, %c0_259], %208 {strides = array<i32>} : memref<16x32xf32, #tpu.memory_space<vmem>>, vector<4x32xf32>,
    %c0_260 = arith.constant 0 : index
    %c224 = arith.constant 224 : index
    %c0_261 = arith.constant 0 : index
    %210 = vector.load %arg2[%c0_260, %c224, %c0_261] : memref<1x256x32xf32, #tpu.memory_space<vmem>>, vector<1x4x32xf32>
    %211 = vector.shape_cast %210 : vector<1x4x32xf32> to vector<4x32xf32>
    %c8_262 = arith.constant 8 : index
    %c0_263 = arith.constant 0 : index
    %212 = vector.load %arg4[%c8_262, %c0_263] : memref<16x32xf32, #tpu.memory_space<vmem>>, vector<4x32xf32>
    tpu.vector_store %arg4[%c8_262, %c0_263], %211 {strides = array<i32>} : memref<16x32xf32, #tpu.memory_space<vmem>>, vector<4x32xf32>,
    %c0_264 = arith.constant 0 : index
    %c240 = arith.constant 240 : index
    %c0_265 = arith.constant 0 : index
    %213 = vector.load %arg2[%c0_264, %c240, %c0_265] : memref<1x256x32xf32, #tpu.memory_space<vmem>>, vector<1x4x32xf32>
    %214 = vector.shape_cast %213 : vector<1x4x32xf32> to vector<4x32xf32>
    %c12_266 = arith.constant 12 : index
    %c0_267 = arith.constant 0 : index
    %215 = vector.load %arg4[%c12_266, %c0_267] : memref<16x32xf32, #tpu.memory_space<vmem>>, vector<4x32xf32>
    tpu.vector_store %arg4[%c12_266, %c0_267], %214 {strides = array<i32>} : memref<16x32xf32, #tpu.memory_space<vmem>>, vector<4x32xf32>,
    %c0_268 = arith.constant 0 : index
    %c0_269 = arith.constant 0 : index
    %216 = vector.load %arg4[%c0_268, %c0_269] : memref<16x32xf32, #tpu.memory_space<vmem>>, vector<16x32xf32>
    %217 = tpu.transpose %216, [1, 0] : vector<16x32xf32> -> vector<32x16xf32>
    %c0_270 = arith.constant 0 : index
    %c0_271 = arith.constant 0 : index
    %c192_272 = arith.constant 192 : index
    %218 = vector.load %arg3[%c0_270, %c0_271, %c192_272] : memref<1x32x256xf32, #tpu.memory_space<vmem>>, vector<1x32x16xf32>
    %219 = vector.shape_cast %218 : vector<1x32x16xf32> to vector<32x16xf32>
    %220 = vector.shape_cast %217 : vector<32x16xf32> to vector<1x32x16xf32>
    tpu.vector_store %arg3[%c0_270, %c0_271, %c192_272], %220 {strides = array<i32>} : memref<1x32x256xf32, #tpu.memory_space<vmem>>, vector<1x32x16xf32>,
    %c0_273 = arith.constant 0 : index
    %c196 = arith.constant 196 : index
    %c0_274 = arith.constant 0 : index
    %221 = vector.load %arg2[%c0_273, %c196, %c0_274] : memref<1x256x32xf32, #tpu.memory_space<vmem>>, vector<1x4x32xf32>
    %222 = vector.shape_cast %221 : vector<1x4x32xf32> to vector<4x32xf32>
    %c0_275 = arith.constant 0 : index
    %c0_276 = arith.constant 0 : index
    %223 = vector.load %arg4[%c0_275, %c0_276] : memref<16x32xf32, #tpu.memory_space<vmem>>, vector<4x32xf32>
    tpu.vector_store %arg4[%c0_275, %c0_276], %222 {strides = array<i32>} : memref<16x32xf32, #tpu.memory_space<vmem>>, vector<4x32xf32>,
    %c0_277 = arith.constant 0 : index
    %c212 = arith.constant 212 : index
    %c0_278 = arith.constant 0 : index
    %224 = vector.load %arg2[%c0_277, %c212, %c0_278] : memref<1x256x32xf32, #tpu.memory_space<vmem>>, vector<1x4x32xf32>
    %225 = vector.shape_cast %224 : vector<1x4x32xf32> to vector<4x32xf32>
    %c4_279 = arith.constant 4 : index
    %c0_280 = arith.constant 0 : index
    %226 = vector.load %arg4[%c4_279, %c0_280] : memref<16x32xf32, #tpu.memory_space<vmem>>, vector<4x32xf32>
    tpu.vector_store %arg4[%c4_279, %c0_280], %225 {strides = array<i32>} : memref<16x32xf32, #tpu.memory_space<vmem>>, vector<4x32xf32>,
    %c0_281 = arith.constant 0 : index
    %c228 = arith.constant 228 : index
    %c0_282 = arith.constant 0 : index
    %227 = vector.load %arg2[%c0_281, %c228, %c0_282] : memref<1x256x32xf32, #tpu.memory_space<vmem>>, vector<1x4x32xf32>
    %228 = vector.shape_cast %227 : vector<1x4x32xf32> to vector<4x32xf32>
    %c8_283 = arith.constant 8 : index
    %c0_284 = arith.constant 0 : index
    %229 = vector.load %arg4[%c8_283, %c0_284] : memref<16x32xf32, #tpu.memory_space<vmem>>, vector<4x32xf32>
    tpu.vector_store %arg4[%c8_283, %c0_284], %228 {strides = array<i32>} : memref<16x32xf32, #tpu.memory_space<vmem>>, vector<4x32xf32>,
    %c0_285 = arith.constant 0 : index
    %c244 = arith.constant 244 : index
    %c0_286 = arith.constant 0 : index
    %230 = vector.load %arg2[%c0_285, %c244, %c0_286] : memref<1x256x32xf32, #tpu.memory_space<vmem>>, vector<1x4x32xf32>
    %231 = vector.shape_cast %230 : vector<1x4x32xf32> to vector<4x32xf32>
    %c12_287 = arith.constant 12 : index
    %c0_288 = arith.constant 0 : index
    %232 = vector.load %arg4[%c12_287, %c0_288] : memref<16x32xf32, #tpu.memory_space<vmem>>, vector<4x32xf32>
    tpu.vector_store %arg4[%c12_287, %c0_288], %231 {strides = array<i32>} : memref<16x32xf32, #tpu.memory_space<vmem>>, vector<4x32xf32>,
    %c0_289 = arith.constant 0 : index
    %c0_290 = arith.constant 0 : index
    %233 = vector.load %arg4[%c0_289, %c0_290] : memref<16x32xf32, #tpu.memory_space<vmem>>, vector<16x32xf32>
    %234 = tpu.transpose %233, [1, 0] : vector<16x32xf32> -> vector<32x16xf32>
    %c0_291 = arith.constant 0 : index
    %c0_292 = arith.constant 0 : index
    %c208_293 = arith.constant 208 : index
    %235 = vector.load %arg3[%c0_291, %c0_292, %c208_293] : memref<1x32x256xf32, #tpu.memory_space<vmem>>, vector<1x32x16xf32>
    %236 = vector.shape_cast %235 : vector<1x32x16xf32> to vector<32x16xf32>
    %237 = vector.shape_cast %234 : vector<32x16xf32> to vector<1x32x16xf32>
    tpu.vector_store %arg3[%c0_291, %c0_292, %c208_293], %237 {strides = array<i32>} : memref<1x32x256xf32, #tpu.memory_space<vmem>>, vector<1x32x16xf32>,
    %c0_294 = arith.constant 0 : index
    %c200 = arith.constant 200 : index
    %c0_295 = arith.constant 0 : index
    %238 = vector.load %arg2[%c0_294, %c200, %c0_295] : memref<1x256x32xf32, #tpu.memory_space<vmem>>, vector<1x4x32xf32>
    %239 = vector.shape_cast %238 : vector<1x4x32xf32> to vector<4x32xf32>
    %c0_296 = arith.constant 0 : index
    %c0_297 = arith.constant 0 : index
    %240 = vector.load %arg4[%c0_296, %c0_297] : memref<16x32xf32, #tpu.memory_space<vmem>>, vector<4x32xf32>
    tpu.vector_store %arg4[%c0_296, %c0_297], %239 {strides = array<i32>} : memref<16x32xf32, #tpu.memory_space<vmem>>, vector<4x32xf32>,
    %c0_298 = arith.constant 0 : index
    %c216 = arith.constant 216 : index
    %c0_299 = arith.constant 0 : index
    %241 = vector.load %arg2[%c0_298, %c216, %c0_299] : memref<1x256x32xf32, #tpu.memory_space<vmem>>, vector<1x4x32xf32>
    %242 = vector.shape_cast %241 : vector<1x4x32xf32> to vector<4x32xf32>
    %c4_300 = arith.constant 4 : index
    %c0_301 = arith.constant 0 : index
    %243 = vector.load %arg4[%c4_300, %c0_301] : memref<16x32xf32, #tpu.memory_space<vmem>>, vector<4x32xf32>
    tpu.vector_store %arg4[%c4_300, %c0_301], %242 {strides = array<i32>} : memref<16x32xf32, #tpu.memory_space<vmem>>, vector<4x32xf32>,
    %c0_302 = arith.constant 0 : index
    %c232 = arith.constant 232 : index
    %c0_303 = arith.constant 0 : index
    %244 = vector.load %arg2[%c0_302, %c232, %c0_303] : memref<1x256x32xf32, #tpu.memory_space<vmem>>, vector<1x4x32xf32>
    %245 = vector.shape_cast %244 : vector<1x4x32xf32> to vector<4x32xf32>
    %c8_304 = arith.constant 8 : index
    %c0_305 = arith.constant 0 : index
    %246 = vector.load %arg4[%c8_304, %c0_305] : memref<16x32xf32, #tpu.memory_space<vmem>>, vector<4x32xf32>
    tpu.vector_store %arg4[%c8_304, %c0_305], %245 {strides = array<i32>} : memref<16x32xf32, #tpu.memory_space<vmem>>, vector<4x32xf32>,
    %c0_306 = arith.constant 0 : index
    %c248 = arith.constant 248 : index
    %c0_307 = arith.constant 0 : index
    %247 = vector.load %arg2[%c0_306, %c248, %c0_307] : memref<1x256x32xf32, #tpu.memory_space<vmem>>, vector<1x4x32xf32>
    %248 = vector.shape_cast %247 : vector<1x4x32xf32> to vector<4x32xf32>
    %c12_308 = arith.constant 12 : index
    %c0_309 = arith.constant 0 : index
    %249 = vector.load %arg4[%c12_308, %c0_309] : memref<16x32xf32, #tpu.memory_space<vmem>>, vector<4x32xf32>
    tpu.vector_store %arg4[%c12_308, %c0_309], %248 {strides = array<i32>} : memref<16x32xf32, #tpu.memory_space<vmem>>, vector<4x32xf32>,
    %c0_310 = arith.constant 0 : index
    %c0_311 = arith.constant 0 : index
    %250 = vector.load %arg4[%c0_310, %c0_311] : memref<16x32xf32, #tpu.memory_space<vmem>>, vector<16x32xf32>
    %251 = tpu.transpose %250, [1, 0] : vector<16x32xf32> -> vector<32x16xf32>
    %c0_312 = arith.constant 0 : index
    %c0_313 = arith.constant 0 : index
    %c224_314 = arith.constant 224 : index
    %252 = vector.load %arg3[%c0_312, %c0_313, %c224_314] : memref<1x32x256xf32, #tpu.memory_space<vmem>>, vector<1x32x16xf32>
    %253 = vector.shape_cast %252 : vector<1x32x16xf32> to vector<32x16xf32>
    %254 = vector.shape_cast %251 : vector<32x16xf32> to vector<1x32x16xf32>
    tpu.vector_store %arg3[%c0_312, %c0_313, %c224_314], %254 {strides = array<i32>} : memref<1x32x256xf32, #tpu.memory_space<vmem>>, vector<1x32x16xf32>,
    %c0_315 = arith.constant 0 : index
    %c204 = arith.constant 204 : index
    %c0_316 = arith.constant 0 : index
    %255 = vector.load %arg2[%c0_315, %c204, %c0_316] : memref<1x256x32xf32, #tpu.memory_space<vmem>>, vector<1x4x32xf32>
    %256 = vector.shape_cast %255 : vector<1x4x32xf32> to vector<4x32xf32>
    %c0_317 = arith.constant 0 : index
    %c0_318 = arith.constant 0 : index
    %257 = vector.load %arg4[%c0_317, %c0_318] : memref<16x32xf32, #tpu.memory_space<vmem>>, vector<4x32xf32>
    tpu.vector_store %arg4[%c0_317, %c0_318], %256 {strides = array<i32>} : memref<16x32xf32, #tpu.memory_space<vmem>>, vector<4x32xf32>,
    %c0_319 = arith.constant 0 : index
    %c220 = arith.constant 220 : index
    %c0_320 = arith.constant 0 : index
    %258 = vector.load %arg2[%c0_319, %c220, %c0_320] : memref<1x256x32xf32, #tpu.memory_space<vmem>>, vector<1x4x32xf32>
    %259 = vector.shape_cast %258 : vector<1x4x32xf32> to vector<4x32xf32>
    %c4_321 = arith.constant 4 : index
    %c0_322 = arith.constant 0 : index
    %260 = vector.load %arg4[%c4_321, %c0_322] : memref<16x32xf32, #tpu.memory_space<vmem>>, vector<4x32xf32>
    tpu.vector_store %arg4[%c4_321, %c0_322], %259 {strides = array<i32>} : memref<16x32xf32, #tpu.memory_space<vmem>>, vector<4x32xf32>,
    %c0_323 = arith.constant 0 : index
    %c236 = arith.constant 236 : index
    %c0_324 = arith.constant 0 : index
    %261 = vector.load %arg2[%c0_323, %c236, %c0_324] : memref<1x256x32xf32, #tpu.memory_space<vmem>>, vector<1x4x32xf32>
    %262 = vector.shape_cast %261 : vector<1x4x32xf32> to vector<4x32xf32>
    %c8_325 = arith.constant 8 : index
    %c0_326 = arith.constant 0 : index
    %263 = vector.load %arg4[%c8_325, %c0_326] : memref<16x32xf32, #tpu.memory_space<vmem>>, vector<4x32xf32>
    tpu.vector_store %arg4[%c8_325, %c0_326], %262 {strides = array<i32>} : memref<16x32xf32, #tpu.memory_space<vmem>>, vector<4x32xf32>,
    %c0_327 = arith.constant 0 : index
    %c252 = arith.constant 252 : index
    %c0_328 = arith.constant 0 : index
    %264 = vector.load %arg2[%c0_327, %c252, %c0_328] : memref<1x256x32xf32, #tpu.memory_space<vmem>>, vector<1x4x32xf32>
    %265 = vector.shape_cast %264 : vector<1x4x32xf32> to vector<4x32xf32>
    %c12_329 = arith.constant 12 : index
    %c0_330 = arith.constant 0 : index
    %266 = vector.load %arg4[%c12_329, %c0_330] : memref<16x32xf32, #tpu.memory_space<vmem>>, vector<4x32xf32>
    tpu.vector_store %arg4[%c12_329, %c0_330], %265 {strides = array<i32>} : memref<16x32xf32, #tpu.memory_space<vmem>>, vector<4x32xf32>,
    %c0_331 = arith.constant 0 : index
    %c0_332 = arith.constant 0 : index
    %267 = vector.load %arg4[%c0_331, %c0_332] : memref<16x32xf32, #tpu.memory_space<vmem>>, vector<16x32xf32>
    %268 = tpu.transpose %267, [1, 0] : vector<16x32xf32> -> vector<32x16xf32>
    %c0_333 = arith.constant 0 : index
    %c0_334 = arith.constant 0 : index
    %c240_335 = arith.constant 240 : index
    %269 = vector.load %arg3[%c0_333, %c0_334, %c240_335] : memref<1x32x256xf32, #tpu.memory_space<vmem>>, vector<1x32x16xf32>
    %270 = vector.shape_cast %269 : vector<1x32x16xf32> to vector<32x16xf32>
    %271 = vector.shape_cast %268 : vector<32x16xf32> to vector<1x32x16xf32>
    tpu.vector_store %arg3[%c0_333, %c0_334, %c240_335], %271 {strides = array<i32>} : memref<1x32x256xf32, #tpu.memory_space<vmem>>, vector<1x32x16xf32>,
    return
  }
  func.func @transform_0(%arg0: i32, %arg1: i32) -> (i32, i32, i32) {
    %c0_i32 = arith.constant 0 : i32
    %c0_i32_0 = arith.constant 0 : i32
    return %arg0, %arg1, %c0_i32 : i32, i32, i32
  }
  func.func @transform_1(%arg0: i32, %arg1: i32) -> (i32, i32, i32) {
    %c0_i32 = arith.constant 0 : i32
    %c0_i32_0 = arith.constant 0 : i32
    return %arg0, %c0_i32, %arg1 : i32, i32, i32
  }
}

</mosaic_0001>

<llo_original>
// kernel: tpu_custom_call.1
$region0: #{tpu_custom_call.1}
  #allocation0 [shape = 'u32[]', space=smem, size = 0x4, offset = 0x4, fixed_abs, tag = 'smem constant byte address 0x4 - core index']
  #allocation1 [shape = 'u32[144,128]{1,0:T(1,128)}', space=vmem, size = 0x12000, scoped, tag = 'internal scratch']
  #allocation2 [shape = 'f32[16,32]{1,0:T(8,128)}', space=vmem, size = 0x2000, scoped, tag = 'scratch operand']
  %s0 = inlined_call_operand.vmem [shape: f32[2,256,32], index: 0, kind: input, shape index: {}]
  %s1 = inlined_call_operand.hbm [shape: f32[2,32,256], index: 1, kind: output, shape index: {}]
  %s2 = sld [smem:[#allocation0]]
  $region37: #{tpu_custom_call.1} parent=0
    _
  %s4 = ssub.s32 1, %s2
  %s5 = scalar_select 0, %s4, %s2
  $region1: #{tpu_custom_call.1} parent=0
    #allocation3 [shape = 'u8[65536]{0}', space=vmem, size = 0x10000, scoped, tag = 'output window, operand 0']
    #allocation4 [shape = 's32[2]{0}', space=sflag, size = 0x8, scoped, tag = 'scoped memory for tpu_custom_call.1']
    %6 = vsyncpa [#allocation4], 0
    %s7 = scalar_lea.sflag [#allocation4], 1
    %8 = vsyncpa %s7, 0
    loop: start=0, step=1, limit=4
    $region2: #{tpu_custom_call.1} parent=1 // loop_pre_header
      _
    $region3: #{tpu_custom_call.1} parent=1 // loop_header
      %s10 = sphi 0, %s14
      %p11 = scmp.ge.s32.totalorder %s10, 4
      %s17 = sphi 0, %s29
      %s18 = sphi 0, %s25
      %s19 = sphi 0, %s17
      %s20 = sphi 0, %s18
      %s21 = sphi 0, %s19
      %s22 = sphi 0, %s20
      %s34 = sphi 0, %s36
      %s37 = sphi 0, %s34
      %s38 = sphi 0, %s37
      %s54 = sphi 0, %s38
      %s62 = sphi 0, %s64
      %s65 = sphi 0, %s62
      %s66 = sphi 0, %s65
      %s82 = sphi 0, %s66
    $region4: #{tpu_custom_call.1} parent=1 // loop_header_branch
      %13 = sbr.rel (%p11) target = $region8
    $region5: #{tpu_custom_call.1} parent=1 // loop_body
      %s15 = ssub.s32 %s10, 1
      %s16 = ssub.s32 %s10, 2
      %s23 = sadd.s32 1, %s18
      %p24 = scmp.ge.s32.totalorder %s23, 1
      %s25 = scalar_select %p24, 0, %s23
      %s26 = sadd.s32 1, %s17
      %s27 = scalar_select %p24, %s26, %s17
      %p28 = scmp.ge.s32.totalorder %s27, 2
      %s29 = scalar_select %p28, 0, %s27
      %s30 = ssub.s32 %s17, %s29
      %s31 = ssub.s32 %s18, %s25
      %s32 = sor.u32 %s30, %s31
      %p33 = scmp.eq.s32.totalorder %s32, 0
      %s35 = sadd.s32 %s34, 1
      %s36 = scalar_select %p33, %s34, %s35
      %p39 = pneg %p33
      %p40 = scmp.eq.s32.totalorder %s10, 1
      %p41 = por %p39, %p40
      %p42 = scmp.ne.s32.totalorder %s34, %s37
      %p43 = scmp.eq.s32.totalorder %s10, 0
      %p44 = por %p42, %p43
      %p45 = scmp.ne.s32.totalorder %s34, %s37
      %p46 = scmp.eq.s32.totalorder %s15, 1
      %p47 = por %p45, %p46
      %p48 = scmp.ne.s32.totalorder %s37, %s38
      %p49 = scmp.eq.s32.totalorder %s15, 0
      %p50 = por %p48, %p49
      %p51 = scmp.ne.s32.totalorder %s37, %s38
      %p52 = scmp.eq.s32.totalorder %s16, 1
      %p53 = por %p51, %p52
      %p55 = scmp.ne.s32.totalorder %s38, %s54
      %p56 = scmp.eq.s32.totalorder %s16, 0
      %p57 = por %p55, %p56
      %s58 = ssub.s32 %s17, %s29
      %s59 = ssub.s32 %s18, %s25
      %s60 = sor.u32 %s58, %s59
      %p61 = scmp.eq.s32.totalorder %s60, 0
      %s63 = sadd.s32 %s62, 1
      %s64 = scalar_select %p61, %s62, %s63
      %p67 = pneg %p61
      %p68 = scmp.eq.s32.totalorder %s10, 1
      %p69 = por %p67, %p68
      %p70 = scmp.ne.s32.totalorder %s62, %s65
      %p71 = scmp.eq.s32.totalorder %s10, 0
      %p72 = por %p70, %p71
      %p73 = scmp.ne.s32.totalorder %s62, %s65
      %p74 = scmp.eq.s32.totalorder %s15, 1
      %p75 = por %p73, %p74
      %p76 = scmp.ne.s32.totalorder %s65, %s66
      %p77 = scmp.eq.s32.totalorder %s15, 0
      %p78 = por %p76, %p77
      %p79 = scmp.ne.s32.totalorder %s65, %s66
      %p80 = scmp.eq.s32.totalorder %s16, 1
      %p81 = por %p79, %p80
      %p83 = scmp.ne.s32.totalorder %s66, %s82
      %p84 = scmp.eq.s32.totalorder %s16, 0
      %p85 = por %p83, %p84
      %p86 = scmp.le.s32.totalorder 1, %s10
      %p87 = scmp.lt.s32.totalorder %s10, 3
      %p88 = pnand %p86, %p87
      %p89 = pneg %p88
      // Predicated region
      $region9: #{tpu_custom_call.1} parent=5 // pred_check
        _
      $region10: #{tpu_custom_call.1} parent=5 // pred_check_branch
        %91 = sbr.rel (%p88) target = $region12
      $region11: #{tpu_custom_call.1} parent=5 // pred_region
        %s92 = ssub.s32 %s10, 1
      $region12: #{tpu_custom_call.1} parent=5 // pred_fallthru
        _
      %p93 = scmp.lt.s32.totalorder %s10, 2
      // Predicated region
      $region13: #{tpu_custom_call.1} parent=5 // pred_check
        %p94 = pneg %p93
      $region14: #{tpu_custom_call.1} parent=5 // pred_check_branch
        %96 = sbr.rel (%p94) target = $region16
      $region15: #{tpu_custom_call.1} parent=5 // pred_region
        // Predicated region
        $region17: #{tpu_custom_call.1} parent=15 // pred_check
          %p97 = pneg %p44
        $region18: #{tpu_custom_call.1} parent=15 // pred_check_branch
          %99 = sbr.rel (%p97) target = $region20
        $region19: #{tpu_custom_call.1} parent=15 // pred_region
          %s100 = smul.u32 32, %s18
          %p101 = scmp.lt.s32.totalorder %s17, 1
          %s102 = scalar_select %p101, %s17, 1
          %p103 = scmp.lt.s32.totalorder %s100, 31
          %s104 = scalar_select %p103, %s100, 31
          %s105 = smul.addr %s102, 32
          %s106 = sadd.s32 %s104, %s105
          %s107 = smul.addr %s106, 8
          %s108 = scalar_lea.vmem %s0, %s107
          %s109 = smul.u32 32, %s18
        $region20: #{tpu_custom_call.1} parent=15 // pred_fallthru
          _
      $region16: #{tpu_custom_call.1} parent=5 // pred_fallthru
        _
      %p110 = scmp.le.s32.totalorder 1, %s10
      %p111 = scmp.lt.s32.totalorder %s10, 3
      %p112 = pnand %p110, %p111
      %p113 = pneg %p112
      // Predicated region
      $region21: #{tpu_custom_call.1} parent=5 // pred_check
        _
      $region22: #{tpu_custom_call.1} parent=5 // pred_check_branch
        %115 = sbr.rel (%p112) target = $region24
      $region23: #{tpu_custom_call.1} parent=5 // pred_region
        %s116 = ssub.s32 %s10, 1
        %s117 = smul.u32 32, %s20
        %p118 = scmp.lt.s32.totalorder %s19, 1
        %s119 = scalar_select %p118, %s19, 1
        %p120 = scmp.lt.s32.totalorder %s117, 31
        %s121 = scalar_select %p120, %s117, 31
        %s122 = smul.addr %s119, 32
        %s123 = sadd.s32 %s121, %s122
        %s124 = smul.addr %s123, 8
        %s125 = scalar_lea.vmem %s0, %s124
        %p126 = pneg %p50
        %p127 = pneg %p47
        %p128 = pneg %p78
        %p129 = pneg %p75
        %s130 = sand.u32 %s65, 1
        %s131 = scalar_lea.sflag [#allocation4], %s130
        %s132 = sand.u32 %s65, 1
        %s133 = smul.addr %s132, 64
        %s134 = scalar_lea.vmem [#allocation3], %s133
        %s135 = smul.u32 32, %s20
        %p136 = scmp.lt.s32.totalorder %s19, 1
        %s137 = scalar_select %p136, %s19, 1
        %p138 = scmp.lt.s32.totalorder %s135, 31
        %s139 = scalar_select %p138, %s135, 31
        %s140 = smul.addr %s137, 32
        %s141 = sadd.s32 %s139, %s140
        %s142 = smul.addr %s141, 8
        %s143 = scalar_lea.vmem %s0, %s142
        %s144 = smul.u32 32, %s20
        %s145 = smul.u32 2, %s20
        %v146 = vld [vmem:[%s143] sm:$0xf]
        %vm147 = vcmask 257024
        %148 = vst.msk [vmem:[#allocation2] sm:$0xf] %vm147, %v146
        %v149 = vld [vmem:[%s143 + $0x10] sm:$0xf]
        %150 = vst.msk [vmem:[#allocation2 + $0x4] sm:$0xf] %vm147, %v149
        %v151 = vld [vmem:[%s143 + $0x20] sm:$0xf]
        %152 = vst.msk [vmem:[#allocation2 + $0x8] sm:$0xf] %vm147, %v151
        %v153 = vld [vmem:[%s143 + $0x30] sm:$0xf]
        %154 = vst.msk [vmem:[#allocation2 + $0xc] sm:$0xf] %vm147, %v153
        %v155 = vld [vmem:[#allocation2] sm:$0xff]
        %v156 = vld [vmem:[#allocation2 + $0x8] sm:$0xff]
        %157 = vxpose.xlu0.b32.start [1/16] %v155, 128
        %158 = vxpose.xlu0.b32.cont [2/16] %v156, 128
        %159 = vxpose.xlu0.b32.cont [3/16] 0.0, 128
        %160 = vxpose.xlu0.b32.cont [4/16] 0.0, 128
        %161 = vxpose.xlu0.b32.cont [5/16] 0.0, 128
        %162 = vxpose.xlu0.b32.cont [6/16] 0.0, 128
        %163 = vxpose.xlu0.b32.cont [7/16] 0.0, 128
        %164 = vxpose.xlu0.b32.cont [8/16] 0.0, 128
        %165 = vxpose.xlu0.b32.cont [9/16] 0.0, 128
        %166 = vxpose.xlu0.b32.cont [10/16] 0.0, 128
        %167 = vxpose.xlu0.b32.cont [11/16] 0.0, 128
        %168 = vxpose.xlu0.b32.cont [12/16] 0.0, 128
        %169 = vxpose.xlu0.b32.cont [13/16] 0.0, 128
        %170 = vxpose.xlu0.b32.cont [14/16] 0.0, 128
        %171 = vxpose.xlu0.b32.cont [15/16] 0.0, 128
        %172 = vxpose.xlu0.b32.end [16/16] 0.0, 128
        %v173 = vpop.trf.xlu0
        %v174 = vpop.trf.xlu0
        %v175 = vpop.trf.xlu0
        %v176 = vpop.trf.xlu0
        %v177 = vpop.trf.xlu0
        %v178 = vpop.trf.xlu0
        %v179 = vpop.trf.xlu0
        %v180 = vpop.trf.xlu0
        %v181 = vpop.trf.xlu0
        %v182 = vpop.trf.xlu0
        %v183 = vpop.trf.xlu0
        %v184 = vpop.trf.xlu0
        %v185 = vpop.trf.xlu0
        %v186 = vpop.trf.xlu0
        %v187 = vpop.trf.xlu0
        %v188 = vpop.trf.xlu0
        %vm189 = vcmask 130048
        %190 = vst.msk [vmem:[%s134] sm:$0xff] %vm189, %v173
        %191 = vst.msk [vmem:[%s134 + $0x10] sm:$0xff] %vm189, %v174
        %192 = vst.msk [vmem:[%s134 + $0x20] sm:$0xff] %vm189, %v175
        %193 = vst.msk [vmem:[%s134 + $0x30] sm:$0xff] %vm189, %v176
        %v194 = vld [vmem:[%s143 + $0x4] sm:$0xf]
        %195 = vst.msk [vmem:[#allocation2] sm:$0xf] %vm147, %v194
        %v196 = vld [vmem:[%s143 + $0x14] sm:$0xf]
        %197 = vst.msk [vmem:[#allocation2 + $0x4] sm:$0xf] %vm147, %v196
        %v198 = vld [vmem:[%s143 + $0x24] sm:$0xf]
        %199 = vst.msk [vmem:[#allocation2 + $0x8] sm:$0xf] %vm147, %v198
        %v200 = vld [vmem:[%s143 + $0x34] sm:$0xf]
        %201 = vst.msk [vmem:[#allocation2 + $0xc] sm:$0xf] %vm147, %v200
        %v202 = vld [vmem:[#allocation2] sm:$0xff]
        %v203 = vld [vmem:[#allocation2 + $0x8] sm:$0xff]
        %204 = vxpose.xlu0.b32.start [1/16] %v202, 128
        %205 = vxpose.xlu0.b32.cont [2/16] %v203, 128
        %206 = vxpose.xlu0.b32.cont [3/16] 0.0, 128
        %207 = vxpose.xlu0.b32.cont [4/16] 0.0, 128
        %208 = vxpose.xlu0.b32.cont [5/16] 0.0, 128
        %209 = vxpose.xlu0.b32.cont [6/16] 0.0, 128
        %210 = vxpose.xlu0.b32.cont [7/16] 0.0, 128
        %211 = vxpose.xlu0.b32.cont [8/16] 0.0, 128
        %212 = vxpose.xlu0.b32.cont [9/16] 0.0, 128
        %213 = vxpose.xlu0.b32.cont [10/16] 0.0, 128
        %214 = vxpose.xlu0.b32.cont [11/16] 0.0, 128
        %215 = vxpose.xlu0.b32.cont [12/16] 0.0, 128
        %216 = vxpose.xlu0.b32.cont [13/16] 0.0, 128
        %217 = vxpose.xlu0.b32.cont [14/16] 0.0, 128
        %218 = vxpose.xlu0.b32.cont [15/16] 0.0, 128
        %219 = vxpose.xlu0.b32.end [16/16] 0.0, 128
        %v220 = vpop.trf.xlu0
        %v221 = vpop.trf.xlu0
        %v222 = vpop.trf.xlu0
        %v223 = vpop.trf.xlu0
        %v224 = vpop.trf.xlu0
        %v225 = vpop.trf.xlu0
        %v226 = vpop.trf.xlu0
        %v227 = vpop.trf.xlu0
        %v228 = vpop.trf.xlu0
        %v229 = vpop.trf.xlu0
        %v230 = vpop.trf.xlu0
        %v231 = vpop.trf.xlu0
        %v232 = vpop.trf.xlu0
        %v233 = vpop.trf.xlu0
        %v234 = vpop.trf.xlu0
        %v235 = vpop.trf.xlu0
        %240 = vrot.lane.b32.xlu0 %v220, 16
        %v241 = vpop.permute.xlu0 %240
        %242 = vrot.lane.b32.xlu0 %v221, 16
        %v243 = vpop.permute.xlu0 %242
        %244 = vrot.lane.b32.xlu0 %v222, 16
        %v245 = vpop.permute.xlu0 %244
        %246 = vrot.lane.b32.xlu0 %v223, 16
        %v247 = vpop.permute.xlu0 %246
        %vm252 = vcmask 261248
        %253 = vst.msk [vmem:[%s134] sm:$0xff] %vm252, %v241
        %254 = vst.msk [vmem:[%s134 + $0x10] sm:$0xff] %vm252, %v243
        %255 = vst.msk [vmem:[%s134 + $0x20] sm:$0xff] %vm252, %v245
        %256 = vst.msk [vmem:[%s134 + $0x30] sm:$0xff] %vm252, %v247
        %v257 = vld [vmem:[%s143 + $0x8] sm:$0xf]
        %258 = vst.msk [vmem:[#allocation2] sm:$0xf] %vm147, %v257
        %v259 = vld [vmem:[%s143 + $0x18] sm:$0xf]
        %260 = vst.msk [vmem:[#allocation2 + $0x4] sm:$0xf] %vm147, %v259
        %v261 = vld [vmem:[%s143 + $0x28] sm:$0xf]
        %262 = vst.msk [vmem:[#allocation2 + $0x8] sm:$0xf] %vm147, %v261
        %v263 = vld [vmem:[%s143 + $0x38] sm:$0xf]
        %264 = vst.msk [vmem:[#allocation2 + $0xc] sm:$0xf] %vm147, %v263
        %v265 = vld [vmem:[#allocation2] sm:$0xff]
        %v266 = vld [vmem:[#allocation2 + $0x8] sm:$0xff]
        %267 = vxpose.xlu0.b32.start [1/16] %v265, 128
        %268 = vxpose.xlu0.b32.cont [2/16] %v266, 128
        %269 = vxpose.xlu0.b32.cont [3/16] 0.0, 128
        %270 = vxpose.xlu0.b32.cont [4/16] 0.0, 128
        %271 = vxpose.xlu0.b32.cont [5/16] 0.0, 128
        %272 = vxpose.xlu0.b32.cont [6/16] 0.0, 128
        %273 = vxpose.xlu0.b32.cont [7/16] 0.0, 128
        %274 = vxpose.xlu0.b32.cont [8/16] 0.0, 128
        %275 = vxpose.xlu0.b32.cont [9/16] 0.0, 128
        %276 = vxpose.xlu0.b32.cont [10/16] 0.0, 128
        %277 = vxpose.xlu0.b32.cont [11/16] 0.0, 128
        %278 = vxpose.xlu0.b32.cont [12/16] 0.0, 128
        %279 = vxpose.xlu0.b32.cont [13/16] 0.0, 128
        %280 = vxpose.xlu0.b32.cont [14/16] 0.0, 128
        %281 = vxpose.xlu0.b32.cont [15/16] 0.0, 128
        %282 = vxpose.xlu0.b32.end [16/16] 0.0, 128
        %v283 = vpop.trf.xlu0
        %v284 = vpop.trf.xlu0
        %v285 = vpop.trf.xlu0
        %v286 = vpop.trf.xlu0
        %v287 = vpop.trf.xlu0
        %v288 = vpop.trf.xlu0
        %v289 = vpop.trf.xlu0
        %v290 = vpop.trf.xlu0
        %v291 = vpop.trf.xlu0
        %v292 = vpop.trf.xlu0
        %v293 = vpop.trf.xlu0
        %v294 = vpop.trf.xlu0
        %v295 = vpop.trf.xlu0
        %v296 = vpop.trf.xlu0
        %v297 = vpop.trf.xlu0
        %v298 = vpop.trf.xlu0
        %303 = vrot.lane.b32.xlu0 %v283, 32
        %v304 = vpop.permute.xlu0 %303
        %305 = vrot.lane.b32.xlu0 %v284, 32
        %v306 = vpop.permute.xlu0 %305
        %307 = vrot.lane.b32.xlu0 %v285, 32
        %v308 = vpop.permute.xlu0 %307
        %309 = vrot.lane.b32.xlu0 %v286, 32
        %v310 = vpop.permute.xlu0 %309
        %vm315 = vcmask 392448
        %316 = vst.msk [vmem:[%s134] sm:$0xff] %vm315, %v304
        %317 = vst.msk [vmem:[%s134 + $0x10] sm:$0xff] %vm315, %v306
        %318 = vst.msk [vmem:[%s134 + $0x20] sm:$0xff] %vm315, %v308
        %319 = vst.msk [vmem:[%s134 + $0x30] sm:$0xff] %vm315, %v310
        %v320 = vld [vmem:[%s143 + $0xc] sm:$0xf]
        %321 = vst.msk [vmem:[#allocation2] sm:$0xf] %vm147, %v320
        %v322 = vld [vmem:[%s143 + $0x1c] sm:$0xf]
        %323 = vst.msk [vmem:[#allocation2 + $0x4] sm:$0xf] %vm147, %v322
        %v324 = vld [vmem:[%s143 + $0x2c] sm:$0xf]
        %325 = vst.msk [vmem:[#allocation2 + $0x8] sm:$0xf] %vm147, %v324
        %v326 = vld [vmem:[%s143 + $0x3c] sm:$0xf]
        %327 = vst.msk [vmem:[#allocation2 + $0xc] sm:$0xf] %vm147, %v326
        %v328 = vld [vmem:[#allocation2] sm:$0xff]
        %v329 = vld [vmem:[#allocation2 + $0x8] sm:$0xff]
        %330 = vxpose.xlu0.b32.start [1/16] %v328, 128
        %331 = vxpose.xlu0.b32.cont [2/16] %v329, 128
        %332 = vxpose.xlu0.b32.cont [3/16] 0.0, 128
        %333 = vxpose.xlu0.b32.cont [4/16] 0.0, 128
        %334 = vxpose.xlu0.b32.cont [5/16] 0.0, 128
        %335 = vxpose.xlu0.b32.cont [6/16] 0.0, 128
        %336 = vxpose.xlu0.b32.cont [7/16] 0.0, 128
        %337 = vxpose.xlu0.b32.cont [8/16] 0.0, 128
        %338 = vxpose.xlu0.b32.cont [9/16] 0.0, 128
        %339 = vxpose.xlu0.b32.cont [10/16] 0.0, 128
        %340 = vxpose.xlu0.b32.cont [11/16] 0.0, 128
        %341 = vxpose.xlu0.b32.cont [12/16] 0.0, 128
        %342 = vxpose.xlu0.b32.cont [13/16] 0.0, 128
        %343 = vxpose.xlu0.b32.cont [14/16] 0.0, 128
        %344 = vxpose.xlu0.b32.cont [15/16] 0.0, 128
        %345 = vxpose.xlu0.b32.end [16/16] 0.0, 128
        %v346 = vpop.trf.xlu0
        %v347 = vpop.trf.xlu0
        %v348 = vpop.trf.xlu0
        %v349 = vpop.trf.xlu0
        %v350 = vpop.trf.xlu0
        %v351 = vpop.trf.xlu0
        %v352 = vpop.trf.xlu0
        %v353 = vpop.trf.xlu0
        %v354 = vpop.trf.xlu0
        %v355 = vpop.trf.xlu0
        %v356 = vpop.trf.xlu0
        %v357 = vpop.trf.xlu0
        %v358 = vpop.trf.xlu0
        %v359 = vpop.trf.xlu0
        %v360 = vpop.trf.xlu0
        %v361 = vpop.trf.xlu0
        %366 = vrot.lane.b32.xlu0 %v346, 48
        %v367 = vpop.permute.xlu0 %366
        %368 = vrot.lane.b32.xlu0 %v347, 48
        %v369 = vpop.permute.xlu0 %368
        %370 = vrot.lane.b32.xlu0 %v348, 48
        %v371 = vpop.permute.xlu0 %370
        %372 = vrot.lane.b32.xlu0 %v349, 48
        %v373 = vpop.permute.xlu0 %372
        %vm378 = vcmask 523648
        %379 = vst.msk [vmem:[%s134] sm:$0xff] %vm378, %v367
        %380 = vst.msk [vmem:[%s134 + $0x10] sm:$0xff] %vm378, %v369
        %381 = vst.msk [vmem:[%s134 + $0x20] sm:$0xff] %vm378, %v371
        %382 = vst.msk [vmem:[%s134 + $0x30] sm:$0xff] %vm378, %v373
        %v383 = vld [vmem:[%s143 + $0x40] sm:$0xf]
        %384 = vst.msk [vmem:[#allocation2] sm:$0xf] %vm147, %v383
        %v385 = vld [vmem:[%s143 + $0x50] sm:$0xf]
        %386 = vst.msk [vmem:[#allocation2 + $0x4] sm:$0xf] %vm147, %v385
        %v387 = vld [vmem:[%s143 + $0x60] sm:$0xf]
        %388 = vst.msk [vmem:[#allocation2 + $0x8] sm:$0xf] %vm147, %v387
        %v389 = vld [vmem:[%s143 + $0x70] sm:$0xf]
        %390 = vst.msk [vmem:[#allocation2 + $0xc] sm:$0xf] %vm147, %v389
        %v391 = vld [vmem:[#allocation2] sm:$0xff]
        %v392 = vld [vmem:[#allocation2 + $0x8] sm:$0xff]
        %393 = vxpose.xlu0.b32.start [1/16] %v391, 128
        %394 = vxpose.xlu0.b32.cont [2/16] %v392, 128
        %395 = vxpose.xlu0.b32.cont [3/16] 0.0, 128
        %396 = vxpose.xlu0.b32.cont [4/16] 0.0, 128
        %397 = vxpose.xlu0.b32.cont [5/16] 0.0, 128
        %398 = vxpose.xlu0.b32.cont [6/16] 0.0, 128
        %399 = vxpose.xlu0.b32.cont [7/16] 0.0, 128
        %400 = vxpose.xlu0.b32.cont [8/16] 0.0, 128
        %401 = vxpose.xlu0.b32.cont [9/16] 0.0, 128
        %402 = vxpose.xlu0.b32.cont [10/16] 0.0, 128
        %403 = vxpose.xlu0.b32.cont [11/16] 0.0, 128
        %404 = vxpose.xlu0.b32.cont [12/16] 0.0, 128
        %405 = vxpose.xlu0.b32.cont [13/16] 0.0, 128
        %406 = vxpose.xlu0.b32.cont [14/16] 0.0, 128
        %407 = vxpose.xlu0.b32.cont [15/16] 0.0, 128
        %408 = vxpose.xlu0.b32.end [16/16] 0.0, 128
        %v409 = vpop.trf.xlu0
        %v410 = vpop.trf.xlu0
        %v411 = vpop.trf.xlu0
        %v412 = vpop.trf.xlu0
        %v413 = vpop.trf.xlu0
        %v414 = vpop.trf.xlu0
        %v415 = vpop.trf.xlu0
        %v416 = vpop.trf.xlu0
        %v417 = vpop.trf.xlu0
        %v418 = vpop.trf.xlu0
        %v419 = vpop.trf.xlu0
        %v420 = vpop.trf.xlu0
        %v421 = vpop.trf.xlu0
        %v422 = vpop.trf.xlu0
        %v423 = vpop.trf.xlu0
        %v424 = vpop.trf.xlu0
        %429 = vrot.lane.b32.xlu0 %v409, 64
        %v430 = vpop.permute.xlu0 %429
        %431 = vrot.lane.b32.xlu0 %v410, 64
        %v432 = vpop.permute.xlu0 %431
        %433 = vrot.lane.b32.xlu0 %v411, 64
        %v434 = vpop.permute.xlu0 %433
        %435 = vrot.lane.b32.xlu0 %v412, 64
        %v436 = vpop.permute.xlu0 %435
        %vm441 = vcmask 654848
        %442 = vst.msk [vmem:[%s134] sm:$0xff] %vm441, %v430
        %443 = vst.msk [vmem:[%s134 + $0x10] sm:$0xff] %vm441, %v432
        %444 = vst.msk [vmem:[%s134 + $0x20] sm:$0xff] %vm441, %v434
        %445 = vst.msk [vmem:[%s134 + $0x30] sm:$0xff] %vm441, %v436
        %v446 = vld [vmem:[%s143 + $0x44] sm:$0xf]
        %447 = vst.msk [vmem:[#allocation2] sm:$0xf] %vm147, %v446
        %v448 = vld [vmem:[%s143 + $0x54] sm:$0xf]
        %449 = vst.msk [vmem:[#allocation2 + $0x4] sm:$0xf] %vm147, %v448
        %v450 = vld [vmem:[%s143 + $0x64] sm:$0xf]
        %451 = vst.msk [vmem:[#allocation2 + $0x8] sm:$0xf] %vm147, %v450
        %v452 = vld [vmem:[%s143 + $0x74] sm:$0xf]
        %453 = vst.msk [vmem:[#allocation2 + $0xc] sm:$0xf] %vm147, %v452
        %v454 = vld [vmem:[#allocation2] sm:$0xff]
        %v455 = vld [vmem:[#allocation2 + $0x8] sm:$0xff]
        %456 = vxpose.xlu0.b32.start [1/16] %v454, 128
        %457 = vxpose.xlu0.b32.cont [2/16] %v455, 128
        %458 = vxpose.xlu0.b32.cont [3/16] 0.0, 128
        %459 = vxpose.xlu0.b32.cont [4/16] 0.0, 128
        %460 = vxpose.xlu0.b32.cont [5/16] 0.0, 128
        %461 = vxpose.xlu0.b32.cont [6/16] 0.0, 128
        %462 = vxpose.xlu0.b32.cont [7/16] 0.0, 128
        %463 = vxpose.xlu0.b32.cont [8/16] 0.0, 128
        %464 = vxpose.xlu0.b32.cont [9/16] 0.0, 128
        %465 = vxpose.xlu0.b32.cont [10/16] 0.0, 128
        %466 = vxpose.xlu0.b32.cont [11/16] 0.0, 128
        %467 = vxpose.xlu0.b32.cont [12/16] 0.0, 128
        %468 = vxpose.xlu0.b32.cont [13/16] 0.0, 128
        %469 = vxpose.xlu0.b32.cont [14/16] 0.0, 128
        %470 = vxpose.xlu0.b32.cont [15/16] 0.0, 128
        %471 = vxpose.xlu0.b32.end [16/16] 0.0, 128
        %v472 = vpop.trf.xlu0
        %v473 = vpop.trf.xlu0
        %v474 = vpop.trf.xlu0
        %v475 = vpop.trf.xlu0
        %v476 = vpop.trf.xlu0
        %v477 = vpop.trf.xlu0
        %v478 = vpop.trf.xlu0
        %v479 = vpop.trf.xlu0
        %v480 = vpop.trf.xlu0
        %v481 = vpop.trf.xlu0
        %v482 = vpop.trf.xlu0
        %v483 = vpop.trf.xlu0
        %v484 = vpop.trf.xlu0
        %v485 = vpop.trf.xlu0
        %v486 = vpop.trf.xlu0
        %v487 = vpop.trf.xlu0
        %492 = vrot.lane.b32.xlu0 %v472, 80
        %v493 = vpop.permute.xlu0 %492
        %494 = vrot.lane.b32.xlu0 %v473, 80
        %v495 = vpop.permute.xlu0 %494
        %496 = vrot.lane.b32.xlu0 %v474, 80
        %v497 = vpop.permute.xlu0 %496
        %498 = vrot.lane.b32.xlu0 %v475, 80
        %v499 = vpop.permute.xlu0 %498
        %vm504 = vcmask 786048
        %505 = vst.msk [vmem:[%s134] sm:$0xff] %vm504, %v493
        %506 = vst.msk [vmem:[%s134 + $0x10] sm:$0xff] %vm504, %v495
        %507 = vst.msk [vmem:[%s134 + $0x20] sm:$0xff] %vm504, %v497
        %508 = vst.msk [vmem:[%s134 + $0x30] sm:$0xff] %vm504, %v499
        %v509 = vld [vmem:[%s143 + $0x48] sm:$0xf]
        %510 = vst.msk [vmem:[#allocation2] sm:$0xf] %vm147, %v509
        %v511 = vld [vmem:[%s143 + $0x58] sm:$0xf]
        %512 = vst.msk [vmem:[#allocation2 + $0x4] sm:$0xf] %vm147, %v511
        %v513 = vld [vmem:[%s143 + $0x68] sm:$0xf]
        %514 = vst.msk [vmem:[#allocation2 + $0x8] sm:$0xf] %vm147, %v513
        %v515 = vld [vmem:[%s143 + $0x78] sm:$0xf]
        %516 = vst.msk [vmem:[#allocation2 + $0xc] sm:$0xf] %vm147, %v515
        %v517 = vld [vmem:[#allocation2] sm:$0xff]
        %v518 = vld [vmem:[#allocation2 + $0x8] sm:$0xff]
        %519 = vxpose.xlu0.b32.start [1/16] %v517, 128
        %520 = vxpose.xlu0.b32.cont [2/16] %v518, 128
        %521 = vxpose.xlu0.b32.cont [3/16] 0.0, 128
        %522 = vxpose.xlu0.b32.cont [4/16] 0.0, 128
        %523 = vxpose.xlu0.b32.cont [5/16] 0.0, 128
        %524 = vxpose.xlu0.b32.cont [6/16] 0.0, 128
        %525 = vxpose.xlu0.b32.cont [7/16] 0.0, 128
        %526 = vxpose.xlu0.b32.cont [8/16] 0.0, 128
        %527 = vxpose.xlu0.b32.cont [9/16] 0.0, 128
        %528 = vxpose.xlu0.b32.cont [10/16] 0.0, 128
        %529 = vxpose.xlu0.b32.cont [11/16] 0.0, 128
        %530 = vxpose.xlu0.b32.cont [12/16] 0.0, 128
        %531 = vxpose.xlu0.b32.cont [13/16] 0.0, 128
        %532 = vxpose.xlu0.b32.cont [14/16] 0.0, 128
        %533 = vxpose.xlu0.b32.cont [15/16] 0.0, 128
        %534 = vxpose.xlu0.b32.end [16/16] 0.0, 128
        %v535 = vpop.trf.xlu0
        %v536 = vpop.trf.xlu0
        %v537 = vpop.trf.xlu0
        %v538 = vpop.trf.xlu0
        %v539 = vpop.trf.xlu0
        %v540 = vpop.trf.xlu0
        %v541 = vpop.trf.xlu0
        %v542 = vpop.trf.xlu0
        %v543 = vpop.trf.xlu0
        %v544 = vpop.trf.xlu0
        %v545 = vpop.trf.xlu0
        %v546 = vpop.trf.xlu0
        %v547 = vpop.trf.xlu0
        %v548 = vpop.trf.xlu0
        %v549 = vpop.trf.xlu0
        %v550 = vpop.trf.xlu0
        %555 = vrot.lane.b32.xlu0 %v535, 96
        %v556 = vpop.permute.xlu0 %555
        %557 = vrot.lane.b32.xlu0 %v536, 96
        %v558 = vpop.permute.xlu0 %557
        %559 = vrot.lane.b32.xlu0 %v537, 96
        %v560 = vpop.permute.xlu0 %559
        %561 = vrot.lane.b32.xlu0 %v538, 96
        %v562 = vpop.permute.xlu0 %561
        %vm567 = vcmask 917248
        %568 = vst.msk [vmem:[%s134] sm:$0xff] %vm567, %v556
        %569 = vst.msk [vmem:[%s134 + $0x10] sm:$0xff] %vm567, %v558
        %570 = vst.msk [vmem:[%s134 + $0x20] sm:$0xff] %vm567, %v560
        %571 = vst.msk [vmem:[%s134 + $0x30] sm:$0xff] %vm567, %v562
        %v572 = vld [vmem:[%s143 + $0x4c] sm:$0xf]
        %573 = vst.msk [vmem:[#allocation2] sm:$0xf] %vm147, %v572
        %v574 = vld [vmem:[%s143 + $0x5c] sm:$0xf]
        %575 = vst.msk [vmem:[#allocation2 + $0x4] sm:$0xf] %vm147, %v574
        %v576 = vld [vmem:[%s143 + $0x6c] sm:$0xf]
        %577 = vst.msk [vmem:[#allocation2 + $0x8] sm:$0xf] %vm147, %v576
        %v578 = vld [vmem:[%s143 + $0x7c] sm:$0xf]
        %579 = vst.msk [vmem:[#allocation2 + $0xc] sm:$0xf] %vm147, %v578
        %v580 = vld [vmem:[#allocation2] sm:$0xff]
        %v581 = vld [vmem:[#allocation2 + $0x8] sm:$0xff]
        %582 = vxpose.xlu0.b32.start [1/16] %v580, 128
        %583 = vxpose.xlu0.b32.cont [2/16] %v581, 128
        %584 = vxpose.xlu0.b32.cont [3/16] 0.0, 128
        %585 = vxpose.xlu0.b32.cont [4/16] 0.0, 128
        %586 = vxpose.xlu0.b32.cont [5/16] 0.0, 128
        %587 = vxpose.xlu0.b32.cont [6/16] 0.0, 128
        %588 = vxpose.xlu0.b32.cont [7/16] 0.0, 128
        %589 = vxpose.xlu0.b32.cont [8/16] 0.0, 128
        %590 = vxpose.xlu0.b32.cont [9/16] 0.0, 128
        %591 = vxpose.xlu0.b32.cont [10/16] 0.0, 128
        %592 = vxpose.xlu0.b32.cont [11/16] 0.0, 128
        %593 = vxpose.xlu0.b32.cont [12/16] 0.0, 128
        %594 = vxpose.xlu0.b32.cont [13/16] 0.0, 128
        %595 = vxpose.xlu0.b32.cont [14/16] 0.0, 128
        %596 = vxpose.xlu0.b32.cont [15/16] 0.0, 128
        %597 = vxpose.xlu0.b32.end [16/16] 0.0, 128
        %v598 = vpop.trf.xlu0
        %v599 = vpop.trf.xlu0
        %v600 = vpop.trf.xlu0
        %v601 = vpop.trf.xlu0
        %v602 = vpop.trf.xlu0
        %v603 = vpop.trf.xlu0
        %v604 = vpop.trf.xlu0
        %v605 = vpop.trf.xlu0
        %v606 = vpop.trf.xlu0
        %v607 = vpop.trf.xlu0
        %v608 = vpop.trf.xlu0
        %v609 = vpop.trf.xlu0
        %v610 = vpop.trf.xlu0
        %v611 = vpop.trf.xlu0
        %v612 = vpop.trf.xlu0
        %v613 = vpop.trf.xlu0
        %618 = vrot.lane.b32.xlu0 %v598, 112
        %v619 = vpop.permute.xlu0 %618
        %620 = vrot.lane.b32.xlu0 %v599, 112
        %v621 = vpop.permute.xlu0 %620
        %622 = vrot.lane.b32.xlu0 %v600, 112
        %v623 = vpop.permute.xlu0 %622
        %624 = vrot.lane.b32.xlu0 %v601, 112
        %v625 = vpop.permute.xlu0 %624
        %vm630 = vcmask 1048448
        %631 = vst.msk [vmem:[%s134] sm:$0xff] %vm630, %v619
        %632 = vst.msk [vmem:[%s134 + $0x10] sm:$0xff] %vm630, %v621
        %633 = vst.msk [vmem:[%s134 + $0x20] sm:$0xff] %vm630, %v623
        %634 = vst.msk [vmem:[%s134 + $0x30] sm:$0xff] %vm630, %v625
        %v635 = vld [vmem:[%s143 + $0x80] sm:$0xf]
        %636 = vst.msk [vmem:[#allocation2] sm:$0xf] %vm147, %v635
        %v637 = vld [vmem:[%s143 + $0x90] sm:$0xf]
        %638 = vst.msk [vmem:[#allocation2 + $0x4] sm:$0xf] %vm147, %v637
        %v639 = vld [vmem:[%s143 + $0xa0] sm:$0xf]
        %640 = vst.msk [vmem:[#allocation2 + $0x8] sm:$0xf] %vm147, %v639
        %v641 = vld [vmem:[%s143 + $0xb0] sm:$0xf]
        %642 = vst.msk [vmem:[#allocation2 + $0xc] sm:$0xf] %vm147, %v641
        %v643 = vld [vmem:[#allocation2] sm:$0xff]
        %v644 = vld [vmem:[#allocation2 + $0x8] sm:$0xff]
        %645 = vxpose.xlu0.b32.start [1/16] %v643, 128
        %646 = vxpose.xlu0.b32.cont [2/16] %v644, 128
        %647 = vxpose.xlu0.b32.cont [3/16] 0.0, 128
        %648 = vxpose.xlu0.b32.cont [4/16] 0.0, 128
        %649 = vxpose.xlu0.b32.cont [5/16] 0.0, 128
        %650 = vxpose.xlu0.b32.cont [6/16] 0.0, 128
        %651 = vxpose.xlu0.b32.cont [7/16] 0.0, 128
        %652 = vxpose.xlu0.b32.cont [8/16] 0.0, 128
        %653 = vxpose.xlu0.b32.cont [9/16] 0.0, 128
        %654 = vxpose.xlu0.b32.cont [10/16] 0.0, 128
        %655 = vxpose.xlu0.b32.cont [11/16] 0.0, 128
        %656 = vxpose.xlu0.b32.cont [12/16] 0.0, 128
        %657 = vxpose.xlu0.b32.cont [13/16] 0.0, 128
        %658 = vxpose.xlu0.b32.cont [14/16] 0.0, 128
        %659 = vxpose.xlu0.b32.cont [15/16] 0.0, 128
        %660 = vxpose.xlu0.b32.end [16/16] 0.0, 128
        %v661 = vpop.trf.xlu0
        %v662 = vpop.trf.xlu0
        %v663 = vpop.trf.xlu0
        %v664 = vpop.trf.xlu0
        %v665 = vpop.trf.xlu0
        %v666 = vpop.trf.xlu0
        %v667 = vpop.trf.xlu0
        %v668 = vpop.trf.xlu0
        %v669 = vpop.trf.xlu0
        %v670 = vpop.trf.xlu0
        %v671 = vpop.trf.xlu0
        %v672 = vpop.trf.xlu0
        %v673 = vpop.trf.xlu0
        %v674 = vpop.trf.xlu0
        %v675 = vpop.trf.xlu0
        %v676 = vpop.trf.xlu0
        %677 = vst.msk [vmem:[%s134 + $0x8] sm:$0xff] %vm189, %v661
        %678 = vst.msk [vmem:[%s134 + $0x18] sm:$0xff] %vm189, %v662
        %679 = vst.msk [vmem:[%s134 + $0x28] sm:$0xff] %vm189, %v663
        %680 = vst.msk [vmem:[%s134 + $0x38] sm:$0xff] %vm189, %v664
        %v681 = vld [vmem:[%s143 + $0x84] sm:$0xf]
        %682 = vst.msk [vmem:[#allocation2] sm:$0xf] %vm147, %v681
        %v683 = vld [vmem:[%s143 + $0x94] sm:$0xf]
        %684 = vst.msk [vmem:[#allocation2 + $0x4] sm:$0xf] %vm147, %v683
        %v685 = vld [vmem:[%s143 + $0xa4] sm:$0xf]
        %686 = vst.msk [vmem:[#allocation2 + $0x8] sm:$0xf] %vm147, %v685
        %v687 = vld [vmem:[%s143 + $0xb4] sm:$0xf]
        %688 = vst.msk [vmem:[#allocation2 + $0xc] sm:$0xf] %vm147, %v687
        %v689 = vld [vmem:[#allocation2] sm:$0xff]
        %v690 = vld [vmem:[#allocation2 + $0x8] sm:$0xff]
        %691 = vxpose.xlu0.b32.start [1/16] %v689, 128
        %692 = vxpose.xlu0.b32.cont [2/16] %v690, 128
        %693 = vxpose.xlu0.b32.cont [3/16] 0.0, 128
        %694 = vxpose.xlu0.b32.cont [4/16] 0.0, 128
        %695 = vxpose.xlu0.b32.cont [5/16] 0.0, 128
        %696 = vxpose.xlu0.b32.cont [6/16] 0.0, 128
        %697 = vxpose.xlu0.b32.cont [7/16] 0.0, 128
        %698 = vxpose.xlu0.b32.cont [8/16] 0.0, 128
        %699 = vxpose.xlu0.b32.cont [9/16] 0.0, 128
        %700 = vxpose.xlu0.b32.cont [10/16] 0.0, 128
        %701 = vxpose.xlu0.b32.cont [11/16] 0.0, 128
        %702 = vxpose.xlu0.b32.cont [12/16] 0.0, 128
        %703 = vxpose.xlu0.b32.cont [13/16] 0.0, 128
        %704 = vxpose.xlu0.b32.cont [14/16] 0.0, 128
        %705 = vxpose.xlu0.b32.cont [15/16] 0.0, 128
        %706 = vxpose.xlu0.b32.end [16/16] 0.0, 128
        %v707 = vpop.trf.xlu0
        %v708 = vpop.trf.xlu0
        %v709 = vpop.trf.xlu0
        %v710 = vpop.trf.xlu0
        %v711 = vpop.trf.xlu0
        %v712 = vpop.trf.xlu0
        %v713 = vpop.trf.xlu0
        %v714 = vpop.trf.xlu0
        %v715 = vpop.trf.xlu0
        %v716 = vpop.trf.xlu0
        %v717 = vpop.trf.xlu0
        %v718 = vpop.trf.xlu0
        %v719 = vpop.trf.xlu0
        %v720 = vpop.trf.xlu0
        %v721 = vpop.trf.xlu0
        %v722 = vpop.trf.xlu0
        %727 = vrot.lane.b32.xlu0 %v707, 16
        %v728 = vpop.permute.xlu0 %727
        %729 = vrot.lane.b32.xlu0 %v708, 16
        %v730 = vpop.permute.xlu0 %729
        %731 = vrot.lane.b32.xlu0 %v709, 16
        %v732 = vpop.permute.xlu0 %731
        %733 = vrot.lane.b32.xlu0 %v710, 16
        %v734 = vpop.permute.xlu0 %733
        %739 = vst.msk [vmem:[%s134 + $0x8] sm:$0xff] %vm252, %v728
        %740 = vst.msk [vmem:[%s134 + $0x18] sm:$0xff] %vm252, %v730
        %741 = vst.msk [vmem:[%s134 + $0x28] sm:$0xff] %vm252, %v732
        %742 = vst.msk [vmem:[%s134 + $0x38] sm:$0xff] %vm252, %v734
        %v743 = vld [vmem:[%s143 + $0x88] sm:$0xf]
        %744 = vst.msk [vmem:[#allocation2] sm:$0xf] %vm147, %v743
        %v745 = vld [vmem:[%s143 + $0x98] sm:$0xf]
        %746 = vst.msk [vmem:[#allocation2 + $0x4] sm:$0xf] %vm147, %v745
        %v747 = vld [vmem:[%s143 + $0xa8] sm:$0xf]
        %748 = vst.msk [vmem:[#allocation2 + $0x8] sm:$0xf] %vm147, %v747
        %v749 = vld [vmem:[%s143 + $0xb8] sm:$0xf]
        %750 = vst.msk [vmem:[#allocation2 + $0xc] sm:$0xf] %vm147, %v749
        %v751 = vld [vmem:[#allocation2] sm:$0xff]
        %v752 = vld [vmem:[#allocation2 + $0x8] sm:$0xff]
        %753 = vxpose.xlu0.b32.start [1/16] %v751, 128
        %754 = vxpose.xlu0.b32.cont [2/16] %v752, 128
        %755 = vxpose.xlu0.b32.cont [3/16] 0.0, 128
        %756 = vxpose.xlu0.b32.cont [4/16] 0.0, 128
        %757 = vxpose.xlu0.b32.cont [5/16] 0.0, 128
        %758 = vxpose.xlu0.b32.cont [6/16] 0.0, 128
        %759 = vxpose.xlu0.b32.cont [7/16] 0.0, 128
        %760 = vxpose.xlu0.b32.cont [8/16] 0.0, 128
        %761 = vxpose.xlu0.b32.cont [9/16] 0.0, 128
        %762 = vxpose.xlu0.b32.cont [10/16] 0.0, 128
        %763 = vxpose.xlu0.b32.cont [11/16] 0.0, 128
        %764 = vxpose.xlu0.b32.cont [12/16] 0.0, 128
        %765 = vxpose.xlu0.b32.cont [13/16] 0.0, 128
        %766 = vxpose.xlu0.b32.cont [14/16] 0.0, 128
        %767 = vxpose.xlu0.b32.cont [15/16] 0.0, 128
        %768 = vxpose.xlu0.b32.end [16/16] 0.0, 128
        %v769 = vpop.trf.xlu0
        %v770 = vpop.trf.xlu0
        %v771 = vpop.trf.xlu0
        %v772 = vpop.trf.xlu0
        %v773 = vpop.trf.xlu0
        %v774 = vpop.trf.xlu0
        %v775 = vpop.trf.xlu0
        %v776 = vpop.trf.xlu0
        %v777 = vpop.trf.xlu0
        %v778 = vpop.trf.xlu0
        %v779 = vpop.trf.xlu0
        %v780 = vpop.trf.xlu0
        %v781 = vpop.trf.xlu0
        %v782 = vpop.trf.xlu0
        %v783 = vpop.trf.xlu0
        %v784 = vpop.trf.xlu0
        %789 = vrot.lane.b32.xlu0 %v769, 32
        %v790 = vpop.permute.xlu0 %789
        %791 = vrot.lane.b32.xlu0 %v770, 32
        %v792 = vpop.permute.xlu0 %791
        %793 = vrot.lane.b32.xlu0 %v771, 32
        %v794 = vpop.permute.xlu0 %793
        %795 = vrot.lane.b32.xlu0 %v772, 32
        %v796 = vpop.permute.xlu0 %795
        %801 = vst.msk [vmem:[%s134 + $0x8] sm:$0xff] %vm315, %v790
        %802 = vst.msk [vmem:[%s134 + $0x18] sm:$0xff] %vm315, %v792
        %803 = vst.msk [vmem:[%s134 + $0x28] sm:$0xff] %vm315, %v794
        %804 = vst.msk [vmem:[%s134 + $0x38] sm:$0xff] %vm315, %v796
        %v805 = vld [vmem:[%s143 + $0x8c] sm:$0xf]
        %806 = vst.msk [vmem:[#allocation2] sm:$0xf] %vm147, %v805
        %v807 = vld [vmem:[%s143 + $0x9c] sm:$0xf]
        %808 = vst.msk [vmem:[#allocation2 + $0x4] sm:$0xf] %vm147, %v807
        %v809 = vld [vmem:[%s143 + $0xac] sm:$0xf]
        %810 = vst.msk [vmem:[#allocation2 + $0x8] sm:$0xf] %vm147, %v809
        %v811 = vld [vmem:[%s143 + $0xbc] sm:$0xf]
        %812 = vst.msk [vmem:[#allocation2 + $0xc] sm:$0xf] %vm147, %v811
        %v813 = vld [vmem:[#allocation2] sm:$0xff]
        %v814 = vld [vmem:[#allocation2 + $0x8] sm:$0xff]
        %815 = vxpose.xlu0.b32.start [1/16] %v813, 128
        %816 = vxpose.xlu0.b32.cont [2/16] %v814, 128
        %817 = vxpose.xlu0.b32.cont [3/16] 0.0, 128
        %818 = vxpose.xlu0.b32.cont [4/16] 0.0, 128
        %819 = vxpose.xlu0.b32.cont [5/16] 0.0, 128
        %820 = vxpose.xlu0.b32.cont [6/16] 0.0, 128
        %821 = vxpose.xlu0.b32.cont [7/16] 0.0, 128
        %822 = vxpose.xlu0.b32.cont [8/16] 0.0, 128
        %823 = vxpose.xlu0.b32.cont [9/16] 0.0, 128
        %824 = vxpose.xlu0.b32.cont [10/16] 0.0, 128
        %825 = vxpose.xlu0.b32.cont [11/16] 0.0, 128
        %826 = vxpose.xlu0.b32.cont [12/16] 0.0, 128
        %827 = vxpose.xlu0.b32.cont [13/16] 0.0, 128
        %828 = vxpose.xlu0.b32.cont [14/16] 0.0, 128
        %829 = vxpose.xlu0.b32.cont [15/16] 0.0, 128
        %830 = vxpose.xlu0.b32.end [16/16] 0.0, 128
        %v831 = vpop.trf.xlu0
        %v832 = vpop.trf.xlu0
        %v833 = vpop.trf.xlu0
        %v834 = vpop.trf.xlu0
        %v835 = vpop.trf.xlu0
        %v836 = vpop.trf.xlu0
        %v837 = vpop.trf.xlu0
        %v838 = vpop.trf.xlu0
        %v839 = vpop.trf.xlu0
        %v840 = vpop.trf.xlu0
        %v841 = vpop.trf.xlu0
        %v842 = vpop.trf.xlu0
        %v843 = vpop.trf.xlu0
        %v844 = vpop.trf.xlu0
        %v845 = vpop.trf.xlu0
        %v846 = vpop.trf.xlu0
        %851 = vrot.lane.b32.xlu0 %v831, 48
        %v852 = vpop.permute.xlu0 %851
        %853 = vrot.lane.b32.xlu0 %v832, 48
        %v854 = vpop.permute.xlu0 %853
        %855 = vrot.lane.b32.xlu0 %v833, 48
        %v856 = vpop.permute.xlu0 %855
        %857 = vrot.lane.b32.xlu0 %v834, 48
        %v858 = vpop.permute.xlu0 %857
        %863 = vst.msk [vmem:[%s134 + $0x8] sm:$0xff] %vm378, %v852
        %864 = vst.msk [vmem:[%s134 + $0x18] sm:$0xff] %vm378, %v854
        %865 = vst.msk [vmem:[%s134 + $0x28] sm:$0xff] %vm378, %v856
        %866 = vst.msk [vmem:[%s134 + $0x38] sm:$0xff] %vm378, %v858
        %v867 = vld [vmem:[%s143 + $0xc0] sm:$0xf]
        %868 = vst.msk [vmem:[#allocation2] sm:$0xf] %vm147, %v867
        %v869 = vld [vmem:[%s143 + $0xd0] sm:$0xf]
        %870 = vst.msk [vmem:[#allocation2 + $0x4] sm:$0xf] %vm147, %v869
        %v871 = vld [vmem:[%s143 + $0xe0] sm:$0xf]
        %872 = vst.msk [vmem:[#allocation2 + $0x8] sm:$0xf] %vm147, %v871
        %v873 = vld [vmem:[%s143 + $0xf0] sm:$0xf]
        %874 = vst.msk [vmem:[#allocation2 + $0xc] sm:$0xf] %vm147, %v873
        %v875 = vld [vmem:[#allocation2] sm:$0xff]
        %v876 = vld [vmem:[#allocation2 + $0x8] sm:$0xff]
        %877 = vxpose.xlu0.b32.start [1/16] %v875, 128
        %878 = vxpose.xlu0.b32.cont [2/16] %v876, 128
        %879 = vxpose.xlu0.b32.cont [3/16] 0.0, 128
        %880 = vxpose.xlu0.b32.cont [4/16] 0.0, 128
        %881 = vxpose.xlu0.b32.cont [5/16] 0.0, 128
        %882 = vxpose.xlu0.b32.cont [6/16] 0.0, 128
        %883 = vxpose.xlu0.b32.cont [7/16] 0.0, 128
        %884 = vxpose.xlu0.b32.cont [8/16] 0.0, 128
        %885 = vxpose.xlu0.b32.cont [9/16] 0.0, 128
        %886 = vxpose.xlu0.b32.cont [10/16] 0.0, 128
        %887 = vxpose.xlu0.b32.cont [11/16] 0.0, 128
        %888 = vxpose.xlu0.b32.cont [12/16] 0.0, 128
        %889 = vxpose.xlu0.b32.cont [13/16] 0.0, 128
        %890 = vxpose.xlu0.b32.cont [14/16] 0.0, 128
        %891 = vxpose.xlu0.b32.cont [15/16] 0.0, 128
        %892 = vxpose.xlu0.b32.end [16/16] 0.0, 128
        %v893 = vpop.trf.xlu0
        %v894 = vpop.trf.xlu0
        %v895 = vpop.trf.xlu0
        %v896 = vpop.trf.xlu0
        %v897 = vpop.trf.xlu0
        %v898 = vpop.trf.xlu0
        %v899 = vpop.trf.xlu0
        %v900 = vpop.trf.xlu0
        %v901 = vpop.trf.xlu0
        %v902 = vpop.trf.xlu0
        %v903 = vpop.trf.xlu0
        %v904 = vpop.trf.xlu0
        %v905 = vpop.trf.xlu0
        %v906 = vpop.trf.xlu0
        %v907 = vpop.trf.xlu0
        %v908 = vpop.trf.xlu0
        %913 = vrot.lane.b32.xlu0 %v893, 64
        %v914 = vpop.permute.xlu0 %913
        %915 = vrot.lane.b32.xlu0 %v894, 64
        %v916 = vpop.permute.xlu0 %915
        %917 = vrot.lane.b32.xlu0 %v895, 64
        %v918 = vpop.permute.xlu0 %917
        %919 = vrot.lane.b32.xlu0 %v896, 64
        %v920 = vpop.permute.xlu0 %919
        %925 = vst.msk [vmem:[%s134 + $0x8] sm:$0xff] %vm441, %v914
        %926 = vst.msk [vmem:[%s134 + $0x18] sm:$0xff] %vm441, %v916
        %927 = vst.msk [vmem:[%s134 + $0x28] sm:$0xff] %vm441, %v918
        %928 = vst.msk [vmem:[%s134 + $0x38] sm:$0xff] %vm441, %v920
        %v929 = vld [vmem:[%s143 + $0xc4] sm:$0xf]
        %930 = vst.msk [vmem:[#allocation2] sm:$0xf] %vm147, %v929
        %v931 = vld [vmem:[%s143 + $0xd4] sm:$0xf]
        %932 = vst.msk [vmem:[#allocation2 + $0x4] sm:$0xf] %vm147, %v931
        %v933 = vld [vmem:[%s143 + $0xe4] sm:$0xf]
        %934 = vst.msk [vmem:[#allocation2 + $0x8] sm:$0xf] %vm147, %v933
        %v935 = vld [vmem:[%s143 + $0xf4] sm:$0xf]
        %936 = vst.msk [vmem:[#allocation2 + $0xc] sm:$0xf] %vm147, %v935
        %v937 = vld [vmem:[#allocation2] sm:$0xff]
        %v938 = vld [vmem:[#allocation2 + $0x8] sm:$0xff]
        %939 = vxpose.xlu0.b32.start [1/16] %v937, 128
        %940 = vxpose.xlu0.b32.cont [2/16] %v938, 128
        %941 = vxpose.xlu0.b32.cont [3/16] 0.0, 128
        %942 = vxpose.xlu0.b32.cont [4/16] 0.0, 128
        %943 = vxpose.xlu0.b32.cont [5/16] 0.0, 128
        %944 = vxpose.xlu0.b32.cont [6/16] 0.0, 128
        %945 = vxpose.xlu0.b32.cont [7/16] 0.0, 128
        %946 = vxpose.xlu0.b32.cont [8/16] 0.0, 128
        %947 = vxpose.xlu0.b32.cont [9/16] 0.0, 128
        %948 = vxpose.xlu0.b32.cont [10/16] 0.0, 128
        %949 = vxpose.xlu0.b32.cont [11/16] 0.0, 128
        %950 = vxpose.xlu0.b32.cont [12/16] 0.0, 128
        %951 = vxpose.xlu0.b32.cont [13/16] 0.0, 128
        %952 = vxpose.xlu0.b32.cont [14/16] 0.0, 128
        %953 = vxpose.xlu0.b32.cont [15/16] 0.0, 128
        %954 = vxpose.xlu0.b32.end [16/16] 0.0, 128
        %v955 = vpop.trf.xlu0
        %v956 = vpop.trf.xlu0
        %v957 = vpop.trf.xlu0
        %v958 = vpop.trf.xlu0
        %v959 = vpop.trf.xlu0
        %v960 = vpop.trf.xlu0
        %v961 = vpop.trf.xlu0
        %v962 = vpop.trf.xlu0
        %v963 = vpop.trf.xlu0
        %v964 = vpop.trf.xlu0
        %v965 = vpop.trf.xlu0
        %v966 = vpop.trf.xlu0
        %v967 = vpop.trf.xlu0
        %v968 = vpop.trf.xlu0
        %v969 = vpop.trf.xlu0
        %v970 = vpop.trf.xlu0
        %975 = vrot.lane.b32.xlu0 %v955, 80
        %v976 = vpop.permute.xlu0 %975
        %977 = vrot.lane.b32.xlu0 %v956, 80
        %v978 = vpop.permute.xlu0 %977
        %979 = vrot.lane.b32.xlu0 %v957, 80
        %v980 = vpop.permute.xlu0 %979
        %981 = vrot.lane.b32.xlu0 %v958, 80
        %v982 = vpop.permute.xlu0 %981
        %987 = vst.msk [vmem:[%s134 + $0x8] sm:$0xff] %vm504, %v976
        %988 = vst.msk [vmem:[%s134 + $0x18] sm:$0xff] %vm504, %v978
        %989 = vst.msk [vmem:[%s134 + $0x28] sm:$0xff] %vm504, %v980
        %990 = vst.msk [vmem:[%s134 + $0x38] sm:$0xff] %vm504, %v982
        %v991 = vld [vmem:[%s143 + $0xc8] sm:$0xf]
        %992 = vst.msk [vmem:[#allocation2] sm:$0xf] %vm147, %v991
        %v993 = vld [vmem:[%s143 + $0xd8] sm:$0xf]
        %994 = vst.msk [vmem:[#allocation2 + $0x4] sm:$0xf] %vm147, %v993
        %v995 = vld [vmem:[%s143 + $0xe8] sm:$0xf]
        %996 = vst.msk [vmem:[#allocation2 + $0x8] sm:$0xf] %vm147, %v995
        %v997 = vld [vmem:[%s143 + $0xf8] sm:$0xf]
        %998 = vst.msk [vmem:[#allocation2 + $0xc] sm:$0xf] %vm147, %v997
        %v999 = vld [vmem:[#allocation2] sm:$0xff]
        %v1000 = vld [vmem:[#allocation2 + $0x8] sm:$0xff]
        %1001 = vxpose.xlu0.b32.start [1/16] %v999, 128
        %1002 = vxpose.xlu0.b32.cont [2/16] %v1000, 128
        %1003 = vxpose.xlu0.b32.cont [3/16] 0.0, 128
        %1004 = vxpose.xlu0.b32.cont [4/16] 0.0, 128
        %1005 = vxpose.xlu0.b32.cont [5/16] 0.0, 128
        %1006 = vxpose.xlu0.b32.cont [6/16] 0.0, 128
        %1007 = vxpose.xlu0.b32.cont [7/16] 0.0, 128
        %1008 = vxpose.xlu0.b32.cont [8/16] 0.0, 128
        %1009 = vxpose.xlu0.b32.cont [9/16] 0.0, 128
        %1010 = vxpose.xlu0.b32.cont [10/16] 0.0, 128
        %1011 = vxpose.xlu0.b32.cont [11/16] 0.0, 128
        %1012 = vxpose.xlu0.b32.cont [12/16] 0.0, 128
        %1013 = vxpose.xlu0.b32.cont [13/16] 0.0, 128
        %1014 = vxpose.xlu0.b32.cont [14/16] 0.0, 128
        %1015 = vxpose.xlu0.b32.cont [15/16] 0.0, 128
        %1016 = vxpose.xlu0.b32.end [16/16] 0.0, 128
        %v1017 = vpop.trf.xlu0
        %v1018 = vpop.trf.xlu0
        %v1019 = vpop.trf.xlu0
        %v1020 = vpop.trf.xlu0
        %v1021 = vpop.trf.xlu0
        %v1022 = vpop.trf.xlu0
        %v1023 = vpop.trf.xlu0
        %v1024 = vpop.trf.xlu0
        %v1025 = vpop.trf.xlu0
        %v1026 = vpop.trf.xlu0
        %v1027 = vpop.trf.xlu0
        %v1028 = vpop.trf.xlu0
        %v1029 = vpop.trf.xlu0
        %v1030 = vpop.trf.xlu0
        %v1031 = vpop.trf.xlu0
        %v1032 = vpop.trf.xlu0
        %1037 = vrot.lane.b32.xlu0 %v1017, 96
        %v1038 = vpop.permute.xlu0 %1037
        %1039 = vrot.lane.b32.xlu0 %v1018, 96
        %v1040 = vpop.permute.xlu0 %1039
        %1041 = vrot.lane.b32.xlu0 %v1019, 96
        %v1042 = vpop.permute.xlu0 %1041
        %1043 = vrot.lane.b32.xlu0 %v1020, 96
        %v1044 = vpop.permute.xlu0 %1043
        %1049 = vst.msk [vmem:[%s134 + $0x8] sm:$0xff] %vm567, %v1038
        %1050 = vst.msk [vmem:[%s134 + $0x18] sm:$0xff] %vm567, %v1040
        %1051 = vst.msk [vmem:[%s134 + $0x28] sm:$0xff] %vm567, %v1042
        %1052 = vst.msk [vmem:[%s134 + $0x38] sm:$0xff] %vm567, %v1044
        %v1053 = vld [vmem:[%s143 + $0xcc] sm:$0xf]
        %1054 = vst.msk [vmem:[#allocation2] sm:$0xf] %vm147, %v1053
        %v1055 = vld [vmem:[%s143 + $0xdc] sm:$0xf]
        %1056 = vst.msk [vmem:[#allocation2 + $0x4] sm:$0xf] %vm147, %v1055
        %v1057 = vld [vmem:[%s143 + $0xec] sm:$0xf]
        %1058 = vst.msk [vmem:[#allocation2 + $0x8] sm:$0xf] %vm147, %v1057
        %v1059 = vld [vmem:[%s143 + $0xfc] sm:$0xf]
        %1060 = vst.msk [vmem:[#allocation2 + $0xc] sm:$0xf] %vm147, %v1059
        %v1061 = vld [vmem:[#allocation2] sm:$0xff]
        %v1062 = vld [vmem:[#allocation2 + $0x8] sm:$0xff]
        %1063 = vxpose.xlu0.b32.start [1/16] %v1061, 128
        %1064 = vxpose.xlu0.b32.cont [2/16] %v1062, 128
        %1065 = vxpose.xlu0.b32.cont [3/16] 0.0, 128
        %1066 = vxpose.xlu0.b32.cont [4/16] 0.0, 128
        %1067 = vxpose.xlu0.b32.cont [5/16] 0.0, 128
        %1068 = vxpose.xlu0.b32.cont [6/16] 0.0, 128
        %1069 = vxpose.xlu0.b32.cont [7/16] 0.0, 128
        %1070 = vxpose.xlu0.b32.cont [8/16] 0.0, 128
        %1071 = vxpose.xlu0.b32.cont [9/16] 0.0, 128
        %1072 = vxpose.xlu0.b32.cont [10/16] 0.0, 128
        %1073 = vxpose.xlu0.b32.cont [11/16] 0.0, 128
        %1074 = vxpose.xlu0.b32.cont [12/16] 0.0, 128
        %1075 = vxpose.xlu0.b32.cont [13/16] 0.0, 128
        %1076 = vxpose.xlu0.b32.cont [14/16] 0.0, 128
        %1077 = vxpose.xlu0.b32.cont [15/16] 0.0, 128
        %1078 = vxpose.xlu0.b32.end [16/16] 0.0, 128
        %v1079 = vpop.trf.xlu0
        %v1080 = vpop.trf.xlu0
        %v1081 = vpop.trf.xlu0
        %v1082 = vpop.trf.xlu0
        %v1083 = vpop.trf.xlu0
        %v1084 = vpop.trf.xlu0
        %v1085 = vpop.trf.xlu0
        %v1086 = vpop.trf.xlu0
        %v1087 = vpop.trf.xlu0
        %v1088 = vpop.trf.xlu0
        %v1089 = vpop.trf.xlu0
        %v1090 = vpop.trf.xlu0
        %v1091 = vpop.trf.xlu0
        %v1092 = vpop.trf.xlu0
        %v1093 = vpop.trf.xlu0
        %v1094 = vpop.trf.xlu0
        %1099 = vrot.lane.b32.xlu0 %v1079, 112
        %v1100 = vpop.permute.xlu0 %1099
        %1101 = vrot.lane.b32.xlu0 %v1080, 112
        %v1102 = vpop.permute.xlu0 %1101
        %1103 = vrot.lane.b32.xlu0 %v1081, 112
        %v1104 = vpop.permute.xlu0 %1103
        %1105 = vrot.lane.b32.xlu0 %v1082, 112
        %v1106 = vpop.permute.xlu0 %1105
        %1111 = vst.msk [vmem:[%s134 + $0x8] sm:$0xff] %vm630, %v1100
        %1112 = vst.msk [vmem:[%s134 + $0x18] sm:$0xff] %vm630, %v1102
        %1113 = vst.msk [vmem:[%s134 + $0x28] sm:$0xff] %vm630, %v1104
        %1114 = vst.msk [vmem:[%s134 + $0x38] sm:$0xff] %vm630, %v1106
        %s1115 = sand.u32 %s65, 1
        %s1116 = scalar_lea.sflag [#allocation4], %s1115
        %s1117 = sand.u32 %s65, 1
        %s1118 = smul.addr %s1117, 64
        %s1119 = scalar_lea.vmem [#allocation3], %s1118
        // Predicated region
        $region25: #{tpu_custom_call.1} parent=23 // pred_check
          %p1120 = pneg %p75
        $region26: #{tpu_custom_call.1} parent=23 // pred_check_branch
          %1122 = sbr.rel (%p1120) target = $region28
        $region27: #{tpu_custom_call.1} parent=23 // pred_region
          %s1123 = smul.u32 2, %s20
          %s1125 = ssub.s32 1024, 1024
          %1126 = vsyncadd %s1116, %s1125
          %s1127 = smul.addr %s19, 8
          %s1128 = sadd.s32 %s1123, %s1127
          %s1129 = smul.addr %s1128, 128
          %s1130 = scalar_lea.hbm %s1, %s1129
          %s1131 = sshll.u32 %s1119, 4
          %s1132 = int_to_ptr.vmem [resolvable:$true] %s1131
          %1137 = dma.vmem_to_hbm [thread:$0]  %s1132, 1024, %s1130, %s1116, 256, 256, 16
        $region28: #{tpu_custom_call.1} parent=23 // pred_fallthru
          _
      $region24: #{tpu_custom_call.1} parent=5 // pred_fallthru
        _
      %p1138 = scmp.le.s32.totalorder 2, %s10
      // Predicated region
      $region29: #{tpu_custom_call.1} parent=5 // pred_check
        %p1139 = pneg %p1138
      $region30: #{tpu_custom_call.1} parent=5 // pred_check_branch
        %1141 = sbr.rel (%p1139) target = $region32
      $region31: #{tpu_custom_call.1} parent=5 // pred_region
        %s1142 = ssub.s32 %s10, 2
        // Predicated region
        $region33: #{tpu_custom_call.1} parent=31 // pred_check
          %p1143 = pneg %p81
        $region34: #{tpu_custom_call.1} parent=31 // pred_check_branch
          %1145 = sbr.rel (%p1143) target = $region36
        $region35: #{tpu_custom_call.1} parent=31 // pred_region
          %s1146 = sand.u32 %s66, 1
          %s1147 = scalar_lea.sflag [#allocation4], %s1146
          %s1148 = sand.u32 %s66, 1
          %s1149 = smul.addr %s1148, 64
          %s1150 = scalar_lea.vmem [#allocation3], %s1149
          %1151 = dma.done %s1147, 1024
        $region36: #{tpu_custom_call.1} parent=31 // pred_fallthru
          _
      $region32: #{tpu_custom_call.1} parent=5 // pred_fallthru
        _
    $region6: #{tpu_custom_call.1} parent=1 // loop_footer
      %s14 = sadd.s32 1, %s10
    $region7: #{tpu_custom_call.1} parent=1 // loop_footer_branch
      %9 = sbr.rel target = $region3
    $region8: #{tpu_custom_call.1} parent=1 // loop_exit
      _
    %1152 = vsyncpa [#allocation4], 1
    %s1153 = scalar_lea.sflag [#allocation4], 1
    %1154 = vsyncpa %s1153, 1

</llo_original>
